<compile_context>
chip_gen: v5e
topology: v5e:2x2
jax: 0.10.0
libtpu: 0.0.40
codegen_flags: <defaults>
</compile_context>

<pallas_src>
import functools

import jax
import jax.numpy as jnp
from jax import lax
from jax.experimental import pallas as pl
from jax.experimental.pallas import tpu as pltpu

BN_EPS = 1e-5
LANE = 128
VMEM_LIMIT = 64 * 1024 * 1024


def _round_up(v, m):
    return (v + m - 1) // m * m


def _pad_last(x, target):
    pad = target - x.shape[-1]
    if pad == 0:
        return x
    return jnp.pad(x, [(0, 0)] * (x.ndim - 1) + [(0, pad)])


# ---------------------------------------------------------------------------
# Kernel A: fused 3x3 conv (single folded K=9*Cp MXU matmul over a halo slab)
# + per-tile partial BatchNorm statistics (sum, sum of squares).
# ---------------------------------------------------------------------------
def _make_conv_stats_kernel(tile_h, width):
    wp2 = width + 2                      # padded image width
    L = tile_h * wp2                     # rows of the flattened output tile
    offsets = [ky * wp2 + kx for ky in range(3) for kx in range(3)]

    def kernel(slab_ref, w_ref, mask_ref, conv_ref, sum_ref, sq_ref):
        slab = slab_ref[...]             # ((TH+2)*(W+2)+2, Cp) f32 halo slab
        # The 9 conv taps are 9 overlapping static row-slices of the flattened
        # slab.  Concatenate them along lanes -> (L, 9*Cp) so the whole conv
        # is ONE MXU matmul with K = 9*Cp (bf16 operands, f32 accumulate).
        patches = jnp.concatenate(
            [slab[o:o + L, :].astype(jnp.bfloat16) for o in offsets], axis=-1)
        acc = jnp.dot(patches, w_ref[...],
                      preferred_element_type=jnp.float32)   # (L, Cout_p) f32
        # Zero the junk rows (flattened column index >= W) so they don't
        # pollute the batch statistics or the output.
        acc = acc * mask_ref[...]
        conv_ref[...] = acc
        # Per-tile partial BN statistics (reduced across tiles in the wrapper).
        sum_ref[...] = jnp.sum(acc, axis=0, keepdims=True)
        sq_ref[...] = jnp.sum(acc * acc, axis=0, keepdims=True)

    return kernel


def _conv_partial_stats(slabs, w_fold, mask, tile_h, width, coutp):
    g, l2p, cp = slabs.shape
    L = tile_h * (width + 2)
    kernel = _make_conv_stats_kernel(tile_h, width)
    return pl.pallas_call(
        kernel,
        grid=(g,),
        in_specs=[
            pl.BlockSpec((None, l2p, cp), lambda i: (i, 0, 0)),   # halo slab
            pl.BlockSpec((9 * cp, coutp), lambda i: (0, 0)),      # folded W
            pl.BlockSpec((L, 1), lambda i: (0, 0)),               # row mask
        ],
        out_specs=[
            pl.BlockSpec((None, L, coutp), lambda i: (i, 0, 0)),  # conv out
            pl.BlockSpec((None, 1, coutp), lambda i: (i, 0, 0)),  # sum
            pl.BlockSpec((None, 1, coutp), lambda i: (i, 0, 0)),  # sum sq
        ],
        out_shape=(
            jax.ShapeDtypeStruct((g, L, coutp), jnp.float32),
            jax.ShapeDtypeStruct((g, 1, coutp), jnp.float32),
            jax.ShapeDtypeStruct((g, 1, coutp), jnp.float32),
        ),
        compiler_params=pltpu.CompilerParams(
            dimension_semantics=("parallel",),
            vmem_limit_bytes=VMEM_LIMIT,
        ),
    )(slabs, w_fold, mask)


# ---------------------------------------------------------------------------
# Kernel B: BN affine (precomputed per-channel scale/shift) + optional
# residual add + ReLU, row-tiled and lane-dense.
# ---------------------------------------------------------------------------
def _bn_act_kernel(conv_ref, scale_ref, shift_ref, out_ref):
    out_ref[...] = jnp.maximum(
        conv_ref[...] * scale_ref[...] + shift_ref[...], 0.0)


def _bn_res_act_kernel(conv_ref, scale_ref, shift_ref, res_ref, out_ref):
    out_ref[...] = jnp.maximum(
        conv_ref[...] * scale_ref[...] + shift_ref[...] + res_ref[...], 0.0)


def _bn_act(conv_tiles, scale, shift, residual=None):
    g, L, cp = conv_tiles.shape
    tile_spec = pl.BlockSpec((None, L, cp), lambda i: (i, 0, 0))
    vec_spec = pl.BlockSpec((1, cp), lambda i: (0, 0))
    if residual is None:
        kernel = _bn_act_kernel                       # no zeros-residual DMA
        in_specs = [tile_spec, vec_spec, vec_spec]
        args = (conv_tiles, scale, shift)
    else:
        kernel = _bn_res_act_kernel
        in_specs = [tile_spec, vec_spec, vec_spec, tile_spec]
        args = (conv_tiles, scale, shift, residual)
    return pl.pallas_call(
        kernel,
        grid=(g,),
        in_specs=in_specs,
        out_specs=tile_spec,
        out_shape=jax.ShapeDtypeStruct((g, L, cp), jnp.float32),
        compiler_params=pltpu.CompilerParams(
            dimension_semantics=("parallel",),
            vmem_limit_bytes=VMEM_LIMIT,
        ),
    )(*args)


# ---------------------------------------------------------------------------
# Plain-JAX glue: layout, channel padding, halo-slab construction, BN folding.
# ---------------------------------------------------------------------------
def _fold_weights(w9, cin_p, cout_p):
    """(9, Cin, Cout) f32 -> (9*cin_p, cout_p) bf16, zero-padded per tap."""
    _, cin, cout = w9.shape
    w = jnp.pad(w9, ((0, 0), (0, cin_p - cin), (0, cout_p - cout)))
    return w.reshape(9 * cin_p, cout_p).astype(jnp.bfloat16)


def _build_slabs(x_nhwc, tile_h):
    """(N, H, W, Cp) -> (N*numt, (TH+2)*(W+2)+2, Cp): spatially zero-padded,
    flattened H-tiles with a 1-row halo each side (+2 trailing pad rows so the
    in-kernel tap slices stay in bounds).  Only (TH+2)/TH duplication."""
    # TODO(synk): for very large H, replace this wrapper-side halo duplication
    # with in-kernel halo DMA (memory_space=pl.ANY + pltpu.make_async_copy).
    n, h, w, cp = x_nhwc.shape
    numt = h // tile_h
    xp = jnp.pad(x_nhwc, ((0, 0), (1, 1), (1, 1), (0, 0)))
    slabs = jnp.stack(
        [xp[:, t * tile_h:t * tile_h + tile_h + 2, :, :] for t in range(numt)],
        axis=1)                                    # (N, numt, TH+2, W+2, Cp)
    slabs = slabs.reshape(n * numt, (tile_h + 2) * (w + 2), cp)
    return jnp.pad(slabs, ((0, 0), (0, 2), (0, 0)))


def _to_tiles(x_nhwc, tile_h):
    """(N, H, W, Cp) -> (N*numt, TH*(W+2), Cp), the kernel's flattened output
    layout (columns x >= W are zero junk)."""
    n, h, w, cp = x_nhwc.shape
    numt = h // tile_h
    xp = jnp.pad(x_nhwc, ((0, 0), (0, 0), (0, 2), (0, 0)))
    return xp.reshape(n * numt, tile_h * (w + 2), cp)


def _from_tiles(tiles, n, h, w, tile_h):
    numt = h // tile_h
    cp = tiles.shape[-1]
    x = tiles.reshape(n, numt, tile_h, w + 2, cp)[:, :, :, :w, :]
    return x.reshape(n, h, w, cp)


def _row_mask(tile_h, w):
    wp2 = w + 2
    col = jnp.arange(tile_h * wp2, dtype=jnp.int32) % wp2
    return (col < w).astype(jnp.float32)[:, None]          # (L, 1)


def _bn_affine(psum, psq, gamma_p, beta_p, count):
    """Fold batch statistics + affine params into per-channel scale/shift."""
    s = jnp.sum(psum, axis=0)                               # (1, Cp)
    sq = jnp.sum(psq, axis=0)                               # (1, Cp)
    mean = s / count
    var = sq / count - mean * mean          # biased variance (BN training)
    scale = gamma_p * lax.rsqrt(var + BN_EPS)
    shift = beta_p - mean * scale
    return scale, shift


@functools.partial(jax.jit, static_argnames=("tile_h",))
def basic_block_forward(x_nchw, params, tile_h=8):
    n, c, h, w = x_nchw.shape
    planes = params["w1"].shape[-1]
    # downsample=None / stride=1 / noskip=False => identity skip needs C match
    assert planes == c and params["w2"].shape[1] == planes
    th = tile_h if h % tile_h == 0 else h
    cp = _round_up(max(c, planes), LANE)    # lane-dense channel padding
    rows = n * h * w                        # rows entering the BN statistics

    # TODO(synk): BatchNorm running_mean/var buffer updates (training
    # bookkeeping) are not modeled; they do not affect the forward output.
    x_nhwc = jnp.transpose(x_nchw, (0, 2, 3, 1)).astype(jnp.float32)
    x_p = _pad_last(x_nhwc, cp)

    w1 = _fold_weights(params["w1"], cp, cp)
    w2 = _fold_weights(params["w2"], cp, cp)
    g1 = _pad_last(params["g1"], cp)
    b1 = _pad_last(params["b1"], cp)
    g2 = _pad_last(params["g2"], cp)
    b2 = _pad_last(params["b2"], cp)
    mask = _row_mask(th, w)

    # ---- conv1 -> bn1 -> relu (no residual) -----------------------------
    slabs1 = _build_slabs(x_p, th)
    conv1, s1, q1 = _conv_partial_stats(slabs1, w1, mask, th, w, cp)
    scale1, shift1 = _bn_affine(s1, q1, g1, b1, rows)
    h1_tiles = _bn_act(conv1, scale1, shift1)

    # ---- conv2 -> bn2 -> (+ identity) -> relu ----------------------------
    h1 = _from_tiles(h1_tiles, n, h, w, th)
    slabs2 = _build_slabs(h1, th)
    conv2, s2, q2 = _conv_partial_stats(slabs2, w2, mask, th, w, cp)
    scale2, shift2 = _bn_affine(s2, q2, g2, b2, rows)
    identity = _to_tiles(x_p, th)
    out_tiles = _bn_act(conv2, scale2, shift2, residual=identity)

    out = _from_tiles(out_tiles, n, h, w, th)[..., :planes]
    return jnp.transpose(out, (0, 3, 1, 2))                 # back to NCHW


# ---------------------------------------------------------------------------
# Pure-JAX reference (same bf16-operand / f32-accumulate matmul precision as
# the Pallas path, so the tolerance stays tight).
# ---------------------------------------------------------------------------
def _reference_forward(x_nchw, params):
    x = jnp.transpose(x_nchw, (0, 2, 3, 1)).astype(jnp.float32)

    def conv3x3(inp, w9):
        cin, cout = w9.shape[1], w9.shape[2]
        w_hwio = w9.reshape(3, 3, cin, cout).astype(jnp.bfloat16)
        return lax.conv_general_dilated(
            inp.astype(jnp.bfloat16), w_hwio, window_strides=(1, 1),
            padding="SAME", dimension_numbers=("NHWC", "HWIO", "NHWC"),
            preferred_element_type=jnp.float32)

    def bn(inp, g, b):
        mean = jnp.mean(inp, axis=(0, 1, 2), keepdims=True)
        var = jnp.mean((inp - mean) ** 2, axis=(0, 1, 2), keepdims=True)
        return (inp - mean) * lax.rsqrt(var + BN_EPS) * g.reshape(1, 1, 1, -1) \
            + b.reshape(1, 1, 1, -1)

    h1 = jnp.maximum(bn(conv3x3(x, params["w1"]), params["g1"], params["b1"]),
                     0.0)
    out = bn(conv3x3(h1, params["w2"]), params["g2"], params["b2"]) + x
    return jnp.transpose(jnp.maximum(out, 0.0), (0, 3, 1, 2))


if __name__ == "__main__":
    # Small shapes: batch=2, inplanes=planes=8, spatial=16x16 (identity skip
    # requires inplanes == planes when downsample is None).
    N, C, H, W = 2, 8, 16, 16
    planes = C

    key = jax.random.PRNGKey(0)
    k_x, k_w1, k_w2, k_g1, k_b1, k_g2, k_b2 = jax.random.split(key, 7)

    x = jax.random.normal(k_x, (N, C, H, W), jnp.float32)
    params = {
        # conv weights stored as (9, Cin, Cout): tap t = ky*3 + kx
        "w1": 0.1 * jax.random.normal(k_w1, (9, C, planes), jnp.float32),
        "w2": 0.1 * jax.random.normal(k_w2, (9, planes, planes), jnp.float32),
        "g1": 1.0 + 0.05 * jax.random.normal(k_g1, (1, planes), jnp.float32),
        "b1": 0.05 * jax.random.normal(k_b1, (1, planes), jnp.float32),
        "g2": 1.0 + 0.05 * jax.random.normal(k_g2, (1, planes), jnp.float32),
        "b2": 0.05 * jax.random.normal(k_b2, (1, planes), jnp.float32),
    }

    out = jax.block_until_ready(basic_block_forward(x, params))
    ref = jax.block_until_ready(_reference_forward(x, params))

    assert out.shape == (N, planes, H, W), out.shape
    max_err = float(jnp.max(jnp.abs(out - ref)))
    # bf16 matmul operands (f32 accumulate) in both paths -> 1e-2 tolerance.
    assert jnp.allclose(out, ref, atol=1e-2, rtol=1e-2), max_err

    print("KERNEL_OK")
</pallas_src>

<mosaic_0001>
module attributes {stable_mosaic.version = 11 : i64} {
  func.func @kernel(%arg0: i32, %arg1: memref<1x182x128xf32, #tpu.memory_space<vmem>>, %arg2: memref<1152x128xbf16, #tpu.memory_space<vmem>>, %arg3: memref<144x1xf32, #tpu.memory_space<vmem>>, %arg4: memref<1x144x128xf32, #tpu.memory_space<vmem>>, %arg5: memref<1x1x128xf32, #tpu.memory_space<vmem>>, %arg6: memref<1x1x128xf32, #tpu.memory_space<vmem>>) attributes {dimension_semantics = [#tpu.dimension_semantics<parallel>], iteration_bounds = array<i64: 4>, scalar_prefetch = 0 : i64, scratch_operands = 0 : i64, tpu.core_type = #tpu.core_type<tc>, window_params = [{transform_indices = @transform_0, window_bounds = array<i64: 1, 182, 128>}, {pipeline_mode = #tpu.pipeline_mode<synchronous>, transform_indices = @transform_1, window_bounds = array<i64: 1152, 128>}, {pipeline_mode = #tpu.pipeline_mode<synchronous>, transform_indices = @transform_2, window_bounds = array<i64: 144, 1>}, {transform_indices = @transform_3, window_bounds = array<i64: 1, 144, 128>}, {transform_indices = @transform_4, window_bounds = array<i64: 1, 1, 128>}, {transform_indices = @transform_5, window_bounds = array<i64: 1, 1, 128>}]} {
    %c0 = arith.constant 0 : index
    %c0_0 = arith.constant 0 : index
    %c0_1 = arith.constant 0 : index
    %0 = vector.load %arg1[%c0, %c0_0, %c0_1] : memref<1x182x128xf32, #tpu.memory_space<vmem>>, vector<1x182x128xf32>
    %1 = vector.shape_cast %0 : vector<1x182x128xf32> to vector<182x128xf32>
    %2 = vector.extract_strided_slice %1 {offsets = [0, 0], sizes = [144, 128], strides = [1, 1]} : vector<182x128xf32> to vector<144x128xf32>
    %3 = arith.truncf %2 : vector<144x128xf32> to vector<144x128xbf16>
    %4 = vector.extract_strided_slice %1 {offsets = [1, 0], sizes = [144, 128], strides = [1, 1]} : vector<182x128xf32> to vector<144x128xf32>
    %5 = arith.truncf %4 : vector<144x128xf32> to vector<144x128xbf16>
    %6 = vector.extract_strided_slice %1 {offsets = [2, 0], sizes = [144, 128], strides = [1, 1]} : vector<182x128xf32> to vector<144x128xf32>
    %7 = arith.truncf %6 : vector<144x128xf32> to vector<144x128xbf16>
    %8 = vector.extract_strided_slice %1 {offsets = [18, 0], sizes = [144, 128], strides = [1, 1]} : vector<182x128xf32> to vector<144x128xf32>
    %9 = arith.truncf %8 : vector<144x128xf32> to vector<144x128xbf16>
    %10 = vector.extract_strided_slice %1 {offsets = [19, 0], sizes = [144, 128], strides = [1, 1]} : vector<182x128xf32> to vector<144x128xf32>
    %11 = arith.truncf %10 : vector<144x128xf32> to vector<144x128xbf16>
    %12 = vector.extract_strided_slice %1 {offsets = [20, 0], sizes = [144, 128], strides = [1, 1]} : vector<182x128xf32> to vector<144x128xf32>
    %13 = arith.truncf %12 : vector<144x128xf32> to vector<144x128xbf16>
    %14 = vector.extract_strided_slice %1 {offsets = [36, 0], sizes = [144, 128], strides = [1, 1]} : vector<182x128xf32> to vector<144x128xf32>
    %15 = arith.truncf %14 : vector<144x128xf32> to vector<144x128xbf16>
    %16 = vector.extract_strided_slice %1 {offsets = [37, 0], sizes = [144, 128], strides = [1, 1]} : vector<182x128xf32> to vector<144x128xf32>
    %17 = arith.truncf %16 : vector<144x128xf32> to vector<144x128xbf16>
    %18 = vector.extract_strided_slice %1 {offsets = [38, 0], sizes = [144, 128], strides = [1, 1]} : vector<182x128xf32> to vector<144x128xf32>
    %19 = arith.truncf %18 : vector<144x128xf32> to vector<144x128xbf16>
    %20 = tpu.concatenate %3, %5, %7, %9, %11, %13, %15, %17, %19 in 1 : vector<144x128xbf16>, vector<144x128xbf16>, vector<144x128xbf16>, vector<144x128xbf16>, vector<144x128xbf16>, vector<144x128xbf16>, vector<144x128xbf16>, vector<144x128xbf16>, vector<144x128xbf16> -> vector<144x1152xbf16>
    %c0_2 = arith.constant 0 : index
    %c0_3 = arith.constant 0 : index
    %21 = vector.load %arg2[%c0_2, %c0_3] : memref<1152x128xbf16, #tpu.memory_space<vmem>>, vector<1152x128xbf16>
    %cst = arith.constant dense<0.000000e+00> : vector<144x128xf32>
    %22 = tpu.matmul %20, %21, %cst {dimension_numbers = #tpu.dot_dimension_numbers<[1], [0], [0], [1], [0, 0, 1, 1], [], []>} : vector<144x1152xbf16>, vector<1152x128xbf16>, vector<144x128xf32> -> vector<144x128xf32>
    %c0_4 = arith.constant 0 : index
    %c0_5 = arith.constant 0 : index
    %23 = vector.load %arg3[%c0_4, %c0_5] : memref<144x1xf32, #tpu.memory_space<vmem>>, vector<144x1xf32>
    %24 = vector.broadcast %23 : vector<144x1xf32> to vector<144x128xf32>
    %25 = arith.mulf %22, %24 : vector<144x128xf32>
    %c0_6 = arith.constant 0 : index
    %c0_7 = arith.constant 0 : index
    %c0_8 = arith.constant 0 : index
    %26 = vector.load %arg4[%c0_6, %c0_7, %c0_8] : memref<1x144x128xf32, #tpu.memory_space<vmem>>, vector<1x144x128xf32>
    %27 = vector.shape_cast %26 : vector<1x144x128xf32> to vector<144x128xf32>
    %28 = vector.shape_cast %25 : vector<144x128xf32> to vector<1x144x128xf32>
    tpu.vector_store %arg4[%c0_6, %c0_7, %c0_8], %28 {strides = array<i32>} : memref<1x144x128xf32, #tpu.memory_space<vmem>>, vector<1x144x128xf32>,
    %cst_9 = arith.constant dense<0.000000e+00> : vector<128xf32>
    %29 = vector.multi_reduction <add>, %25, %cst_9 [0] : vector<144x128xf32> to vector<128xf32>
    %30 = vector.shape_cast %29 : vector<128xf32> to vector<1x128xf32>
    %c0_10 = arith.constant 0 : index
    %c0_11 = arith.constant 0 : index
    %c0_12 = arith.constant 0 : index
    %31 = vector.load %arg5[%c0_10, %c0_11, %c0_12] : memref<1x1x128xf32, #tpu.memory_space<vmem>>, vector<1x1x128xf32>
    %32 = vector.shape_cast %31 : vector<1x1x128xf32> to vector<1x128xf32>
    %33 = vector.shape_cast %30 : vector<1x128xf32> to vector<1x1x128xf32>
    tpu.vector_store %arg5[%c0_10, %c0_11, %c0_12], %33 {strides = array<i32>} : memref<1x1x128xf32, #tpu.memory_space<vmem>>, vector<1x1x128xf32>,
    %34 = arith.mulf %25, %25 : vector<144x128xf32>
    %cst_13 = arith.constant dense<0.000000e+00> : vector<128xf32>
    %35 = vector.multi_reduction <add>, %34, %cst_13 [0] : vector<144x128xf32> to vector<128xf32>
    %36 = vector.shape_cast %35 : vector<128xf32> to vector<1x128xf32>
    %c0_14 = arith.constant 0 : index
    %c0_15 = arith.constant 0 : index
    %c0_16 = arith.constant 0 : index
    %37 = vector.load %arg6[%c0_14, %c0_15, %c0_16] : memref<1x1x128xf32, #tpu.memory_space<vmem>>, vector<1x1x128xf32>
    %38 = vector.shape_cast %37 : vector<1x1x128xf32> to vector<1x128xf32>
    %39 = vector.shape_cast %36 : vector<1x128xf32> to vector<1x1x128xf32>
    tpu.vector_store %arg6[%c0_14, %c0_15, %c0_16], %39 {strides = array<i32>} : memref<1x1x128xf32, #tpu.memory_space<vmem>>, vector<1x1x128xf32>,
    return
  }
  func.func @transform_0(%arg0: i32) -> (i32, i32, i32) {
    %c0_i32 = arith.constant 0 : i32
    %c0_i32_0 = arith.constant 0 : i32
    %c0_i32_1 = arith.constant 0 : i32
    return %arg0, %c0_i32, %c0_i32_0 : i32, i32, i32
  }
  func.func @transform_1(%arg0: i32) -> (i32, i32) {
    %c0_i32 = arith.constant 0 : i32
    %c0_i32_0 = arith.constant 0 : i32
    %c0_i32_1 = arith.constant 0 : i32
    return %c0_i32, %c0_i32_0 : i32, i32
  }
  func.func @transform_2(%arg0: i32) -> (i32, i32) {
    %c0_i32 = arith.constant 0 : i32
    %c0_i32_0 = arith.constant 0 : i32
    %c0_i32_1 = arith.constant 0 : i32
    return %c0_i32, %c0_i32_0 : i32, i32
  }
  func.func @transform_3(%arg0: i32) -> (i32, i32, i32) {
    %c0_i32 = arith.constant 0 : i32
    %c0_i32_0 = arith.constant 0 : i32
    %c0_i32_1 = arith.constant 0 : i32
    return %arg0, %c0_i32, %c0_i32_0 : i32, i32, i32
  }
  func.func @transform_4(%arg0: i32) -> (i32, i32, i32) {
    %c0_i32 = arith.constant 0 : i32
    %c0_i32_0 = arith.constant 0 : i32
    %c0_i32_1 = arith.constant 0 : i32
    return %arg0, %c0_i32, %c0_i32_0 : i32, i32, i32
  }
  func.func @transform_5(%arg0: i32) -> (i32, i32, i32) {
    %c0_i32 = arith.constant 0 : i32
    %c0_i32_0 = arith.constant 0 : i32
    %c0_i32_1 = arith.constant 0 : i32
    return %arg0, %c0_i32, %c0_i32_0 : i32, i32, i32
  }
}

module attributes {stable_mosaic.version = 11 : i64} {
  func.func @_bn_act_kernel(%arg0: i32, %arg1: memref<1x144x128xf32, #tpu.memory_space<vmem>>, %arg2: memref<1x128xf32, #tpu.memory_space<vmem>>, %arg3: memref<1x128xf32, #tpu.memory_space<vmem>>, %arg4: memref<1x144x128xf32, #tpu.memory_space<vmem>>) attributes {dimension_semantics = [#tpu.dimension_semantics<parallel>], iteration_bounds = array<i64: 4>, scalar_prefetch = 0 : i64, scratch_operands = 0 : i64, tpu.core_type = #tpu.core_type<tc>, window_params = [{transform_indices = @transform_0, window_bounds = array<i64: 1, 144, 128>}, {pipeline_mode = #tpu.pipeline_mode<synchronous>, transform_indices = @transform_1, window_bounds = array<i64: 1, 128>}, {pipeline_mode = #tpu.pipeline_mode<synchronous>, transform_indices = @transform_2, window_bounds = array<i64: 1, 128>}, {transform_indices = @transform_3, window_bounds = array<i64: 1, 144, 128>}]} {
    %c0 = arith.constant 0 : index
    %c0_0 = arith.constant 0 : index
    %c0_1 = arith.constant 0 : index
    %0 = vector.load %arg1[%c0, %c0_0, %c0_1] : memref<1x144x128xf32, #tpu.memory_space<vmem>>, vector<1x144x128xf32>
    %1 = vector.shape_cast %0 : vector<1x144x128xf32> to vector<144x128xf32>
    %c0_2 = arith.constant 0 : index
    %c0_3 = arith.constant 0 : index
    %2 = vector.load %arg2[%c0_2, %c0_3] : memref<1x128xf32, #tpu.memory_space<vmem>>, vector<1x128xf32>
    %3 = vector.broadcast %2 : vector<1x128xf32> to vector<144x128xf32>
    %4 = arith.mulf %1, %3 : vector<144x128xf32>
    %c0_4 = arith.constant 0 : index
    %c0_5 = arith.constant 0 : index
    %5 = vector.load %arg3[%c0_4, %c0_5] : memref<1x128xf32, #tpu.memory_space<vmem>>, vector<1x128xf32>
    %6 = vector.broadcast %5 : vector<1x128xf32> to vector<144x128xf32>
    %7 = arith.addf %4, %6 : vector<144x128xf32>
    %cst = arith.constant 0.000000e+00 : f32
    %8 = vector.broadcast %cst : f32 to vector<144x128xf32>
    %9 = arith.maximumf %7, %8 : vector<144x128xf32>
    %c0_6 = arith.constant 0 : index
    %c0_7 = arith.constant 0 : index
    %c0_8 = arith.constant 0 : index
    %10 = vector.load %arg4[%c0_6, %c0_7, %c0_8] : memref<1x144x128xf32, #tpu.memory_space<vmem>>, vector<1x144x128xf32>
    %11 = vector.shape_cast %10 : vector<1x144x128xf32> to vector<144x128xf32>
    %12 = vector.shape_cast %9 : vector<144x128xf32> to vector<1x144x128xf32>
    tpu.vector_store %arg4[%c0_6, %c0_7, %c0_8], %12 {strides = array<i32>} : memref<1x144x128xf32, #tpu.memory_space<vmem>>, vector<1x144x128xf32>,
    return
  }
  func.func @transform_0(%arg0: i32) -> (i32, i32, i32) {
    %c0_i32 = arith.constant 0 : i32
    %c0_i32_0 = arith.constant 0 : i32
    %c0_i32_1 = arith.constant 0 : i32
    return %arg0, %c0_i32, %c0_i32_0 : i32, i32, i32
  }
  func.func @transform_1(%arg0: i32) -> (i32, i32) {
    %c0_i32 = arith.constant 0 : i32
    %c0_i32_0 = arith.constant 0 : i32
    %c0_i32_1 = arith.constant 0 : i32
    return %c0_i32, %c0_i32_0 : i32, i32
  }
  func.func @transform_2(%arg0: i32) -> (i32, i32) {
    %c0_i32 = arith.constant 0 : i32
    %c0_i32_0 = arith.constant 0 : i32
    %c0_i32_1 = arith.constant 0 : i32
    return %c0_i32, %c0_i32_0 : i32, i32
  }
  func.func @transform_3(%arg0: i32) -> (i32, i32, i32) {
    %c0_i32 = arith.constant 0 : i32
    %c0_i32_0 = arith.constant 0 : i32
    %c0_i32_1 = arith.constant 0 : i32
    return %arg0, %c0_i32, %c0_i32_0 : i32, i32, i32
  }
}

module attributes {stable_mosaic.version = 11 : i64} {
  func.func @_bn_res_act_kernel(%arg0: i32, %arg1: memref<1x144x128xf32, #tpu.memory_space<vmem>>, %arg2: memref<1x128xf32, #tpu.memory_space<vmem>>, %arg3: memref<1x128xf32, #tpu.memory_space<vmem>>, %arg4: memref<1x144x128xf32, #tpu.memory_space<vmem>>, %arg5: memref<1x144x128xf32, #tpu.memory_space<vmem>>) attributes {dimension_semantics = [#tpu.dimension_semantics<parallel>], iteration_bounds = array<i64: 4>, scalar_prefetch = 0 : i64, scratch_operands = 0 : i64, tpu.core_type = #tpu.core_type<tc>, window_params = [{transform_indices = @transform_0, window_bounds = array<i64: 1, 144, 128>}, {pipeline_mode = #tpu.pipeline_mode<synchronous>, transform_indices = @transform_1, window_bounds = array<i64: 1, 128>}, {pipeline_mode = #tpu.pipeline_mode<synchronous>, transform_indices = @transform_2, window_bounds = array<i64: 1, 128>}, {transform_indices = @transform_3, window_bounds = array<i64: 1, 144, 128>}, {transform_indices = @transform_4, window_bounds = array<i64: 1, 144, 128>}]} {
    %c0 = arith.constant 0 : index
    %c0_0 = arith.constant 0 : index
    %c0_1 = arith.constant 0 : index
    %0 = vector.load %arg1[%c0, %c0_0, %c0_1] : memref<1x144x128xf32, #tpu.memory_space<vmem>>, vector<1x144x128xf32>
    %1 = vector.shape_cast %0 : vector<1x144x128xf32> to vector<144x128xf32>
    %c0_2 = arith.constant 0 : index
    %c0_3 = arith.constant 0 : index
    %2 = vector.load %arg2[%c0_2, %c0_3] : memref<1x128xf32, #tpu.memory_space<vmem>>, vector<1x128xf32>
    %3 = vector.broadcast %2 : vector<1x128xf32> to vector<144x128xf32>
    %4 = arith.mulf %1, %3 : vector<144x128xf32>
    %c0_4 = arith.constant 0 : index
    %c0_5 = arith.constant 0 : index
    %5 = vector.load %arg3[%c0_4, %c0_5] : memref<1x128xf32, #tpu.memory_space<vmem>>, vector<1x128xf32>
    %6 = vector.broadcast %5 : vector<1x128xf32> to vector<144x128xf32>
    %7 = arith.addf %4, %6 : vector<144x128xf32>
    %c0_6 = arith.constant 0 : index
    %c0_7 = arith.constant 0 : index
    %c0_8 = arith.constant 0 : index
    %8 = vector.load %arg4[%c0_6, %c0_7, %c0_8] : memref<1x144x128xf32, #tpu.memory_space<vmem>>, vector<1x144x128xf32>
    %9 = vector.shape_cast %8 : vector<1x144x128xf32> to vector<144x128xf32>
    %10 = arith.addf %7, %9 : vector<144x128xf32>
    %cst = arith.constant 0.000000e+00 : f32
    %11 = vector.broadcast %cst : f32 to vector<144x128xf32>
    %12 = arith.maximumf %10, %11 : vector<144x128xf32>
    %c0_9 = arith.constant 0 : index
    %c0_10 = arith.constant 0 : index
    %c0_11 = arith.constant 0 : index
    %13 = vector.load %arg5[%c0_9, %c0_10, %c0_11] : memref<1x144x128xf32, #tpu.memory_space<vmem>>, vector<1x144x128xf32>
    %14 = vector.shape_cast %13 : vector<1x144x128xf32> to vector<144x128xf32>
    %15 = vector.shape_cast %12 : vector<144x128xf32> to vector<1x144x128xf32>
    tpu.vector_store %arg5[%c0_9, %c0_10, %c0_11], %15 {strides = array<i32>} : memref<1x144x128xf32, #tpu.memory_space<vmem>>, vector<1x144x128xf32>,
    return
  }
  func.func @transform_0(%arg0: i32) -> (i32, i32, i32) {
    %c0_i32 = arith.constant 0 : i32
    %c0_i32_0 = arith.constant 0 : i32
    %c0_i32_1 = arith.constant 0 : i32
    return %arg0, %c0_i32, %c0_i32_0 : i32, i32, i32
  }
  func.func @transform_1(%arg0: i32) -> (i32, i32) {
    %c0_i32 = arith.constant 0 : i32
    %c0_i32_0 = arith.constant 0 : i32
    %c0_i32_1 = arith.constant 0 : i32
    return %c0_i32, %c0_i32_0 : i32, i32
  }
  func.func @transform_2(%arg0: i32) -> (i32, i32) {
    %c0_i32 = arith.constant 0 : i32
    %c0_i32_0 = arith.constant 0 : i32
    %c0_i32_1 = arith.constant 0 : i32
    return %c0_i32, %c0_i32_0 : i32, i32
  }
  func.func @transform_3(%arg0: i32) -> (i32, i32, i32) {
    %c0_i32 = arith.constant 0 : i32
    %c0_i32_0 = arith.constant 0 : i32
    %c0_i32_1 = arith.constant 0 : i32
    return %arg0, %c0_i32, %c0_i32_0 : i32, i32, i32
  }
  func.func @transform_4(%arg0: i32) -> (i32, i32, i32) {
    %c0_i32 = arith.constant 0 : i32
    %c0_i32_0 = arith.constant 0 : i32
    %c0_i32_1 = arith.constant 0 : i32
    return %arg0, %c0_i32, %c0_i32_0 : i32, i32, i32
  }
}

</mosaic_0001>

<llo_original>
// kernel: basic_block_forward.5
$region0: #{basic_block_forward.5}
  #allocation0 [shape = 'u32[]', space=smem, size = 0x4, offset = 0x4, fixed_abs, tag = 'smem constant byte address 0x4 - core index']
  #allocation1 [shape = 'u32[72,128]{1,0:T(1,128)}', space=vmem, size = 0x9000, scoped, tag = 'internal scratch']
  %s0 = inlined_call_operand.vmem [shape: f32[4,144,128], index: 0, kind: input, shape index: {}]
  %s1 = inlined_call_operand.vmem [shape: f32[1,128], index: 1, kind: input, shape index: {}]
  %s2 = inlined_call_operand.vmem [shape: f32[1,128], index: 2, kind: input, shape index: {}]
  %s3 = inlined_call_operand.vmem [shape: f32[4,144,128], index: 3, kind: output, shape index: {}]
  %s4 = sld [smem:[#allocation0]]
  $region45: #{basic_block_forward.5} parent=0
    _
  %s6 = ssub.s32 1, %s4
  %s7 = scalar_select 0, %s6, %s4
  loop: start=0, step=1, limit=6
  $region2: #{basic_block_forward.5} parent=0 // loop_pre_header
    _
  $region3: #{basic_block_forward.5} parent=0 // loop_header
    %s9 = sphi 0, %s13
    %p10 = scmp.ge.s32.totalorder %s9, 6
    %s19 = sphi 0, %s21
    %s22 = sphi 0, %s19
    %s23 = sphi 0, %s22
    %s39 = sphi 0, %s23
    %s43 = sphi 0, %s43
    %s45 = sphi 0, %s43
    %s46 = sphi 0, %s45
    %s60 = sphi 0, %s46
    %s64 = sphi 0, %s64
    %s66 = sphi 0, %s64
    %s67 = sphi 0, %s66
    %s81 = sphi 0, %s67
    %s87 = sphi 0, %s89
    %s90 = sphi 0, %s87
    %s91 = sphi 0, %s90
    %s107 = sphi 0, %s91
  $region4: #{basic_block_forward.5} parent=0 // loop_header_branch
    %12 = sbr.rel (%p10) target = $region8
  $region5: #{basic_block_forward.5} parent=0 // loop_body
    %s14 = ssub.s32 %s9, 1
    %s15 = ssub.s32 %s9, 2
    %s16 = sadd.s32 %s9, 1
    %s17 = ssub.s32 %s9, %s16
    %p18 = scmp.eq.s32.totalorder %s17, 0
    %s20 = sadd.s32 %s19, 1
    %s21 = scalar_select %p18, %s19, %s20
    %p24 = pneg %p18
    %p25 = scmp.eq.s32.totalorder %s9, 3
    %p26 = por %p24, %p25
    %p27 = scmp.ne.s32.totalorder %s19, %s22
    %p28 = scmp.eq.s32.totalorder %s9, 0
    %p29 = por %p27, %p28
    %p30 = scmp.ne.s32.totalorder %s19, %s22
    %p31 = scmp.eq.s32.totalorder %s14, 3
    %p32 = por %p30, %p31
    %p33 = scmp.ne.s32.totalorder %s22, %s23
    %p34 = scmp.eq.s32.totalorder %s14, 0
    %p35 = por %p33, %p34
    %p36 = scmp.ne.s32.totalorder %s22, %s23
    %p37 = scmp.eq.s32.totalorder %s15, 3
    %p38 = por %p36, %p37
    %p40 = scmp.ne.s32.totalorder %s23, %s39
    %p41 = scmp.eq.s32.totalorder %s15, 0
    %p42 = por %p40, %p41
    %s44 = sadd.s32 %s43, 1
    %p47 = scmp.eq.s32.totalorder %s9, 3
    %p48 = scmp.ne.s32.totalorder %s43, %s45
    %p49 = scmp.eq.s32.totalorder %s9, 0
    %p50 = por %p48, %p49
    %p51 = scmp.ne.s32.totalorder %s43, %s45
    %p52 = scmp.eq.s32.totalorder %s14, 3
    %p53 = por %p51, %p52
    %p54 = scmp.ne.s32.totalorder %s45, %s46
    %p55 = scmp.eq.s32.totalorder %s14, 0
    %p56 = por %p54, %p55
    %p57 = scmp.ne.s32.totalorder %s45, %s46
    %p58 = scmp.eq.s32.totalorder %s15, 3
    %p59 = por %p57, %p58
    %p61 = scmp.ne.s32.totalorder %s46, %s60
    %p62 = scmp.eq.s32.totalorder %s15, 0
    %p63 = por %p61, %p62
    %s65 = sadd.s32 %s64, 1
    %p68 = scmp.eq.s32.totalorder %s9, 3
    %p69 = scmp.ne.s32.totalorder %s64, %s66
    %p70 = scmp.eq.s32.totalorder %s9, 0
    %p71 = por %p69, %p70
    %p72 = scmp.ne.s32.totalorder %s64, %s66
    %p73 = scmp.eq.s32.totalorder %s14, 3
    %p74 = por %p72, %p73
    %p75 = scmp.ne.s32.totalorder %s66, %s67
    %p76 = scmp.eq.s32.totalorder %s14, 0
    %p77 = por %p75, %p76
    %p78 = scmp.ne.s32.totalorder %s66, %s67
    %p79 = scmp.eq.s32.totalorder %s15, 3
    %p80 = por %p78, %p79
    %p82 = scmp.ne.s32.totalorder %s67, %s81
    %p83 = scmp.eq.s32.totalorder %s15, 0
    %p84 = por %p82, %p83
    %s85 = ssub.s32 %s9, %s16
    %p86 = scmp.eq.s32.totalorder %s85, 0
    %s88 = sadd.s32 %s87, 1
    %s89 = scalar_select %p86, %s87, %s88
    %p92 = pneg %p86
    %p93 = scmp.eq.s32.totalorder %s9, 3
    %p94 = por %p92, %p93
    %p95 = scmp.ne.s32.totalorder %s87, %s90
    %p96 = scmp.eq.s32.totalorder %s9, 0
    %p97 = por %p95, %p96
    %p98 = scmp.ne.s32.totalorder %s87, %s90
    %p99 = scmp.eq.s32.totalorder %s14, 3
    %p100 = por %p98, %p99
    %p101 = scmp.ne.s32.totalorder %s90, %s91
    %p102 = scmp.eq.s32.totalorder %s14, 0
    %p103 = por %p101, %p102
    %p104 = scmp.ne.s32.totalorder %s90, %s91
    %p105 = scmp.eq.s32.totalorder %s15, 3
    %p106 = por %p104, %p105
    %p108 = scmp.ne.s32.totalorder %s91, %s107
    %p109 = scmp.eq.s32.totalorder %s15, 0
    %p110 = por %p108, %p109
    %p111 = scmp.le.s32.totalorder 1, %s9
    %p112 = scmp.lt.s32.totalorder %s9, 5
    %p113 = pnand %p111, %p112
    %p114 = pneg %p113
    // Predicated region
    $region9: #{basic_block_forward.5} parent=5 // pred_check
      _
    $region10: #{basic_block_forward.5} parent=5 // pred_check_branch
      %116 = sbr.rel (%p113) target = $region12
    $region11: #{basic_block_forward.5} parent=5 // pred_region
      %s117 = ssub.s32 %s9, 1
      // Predicated region
      $region13: #{basic_block_forward.5} parent=11 // pred_check
        %p118 = pneg %p56
      $region14: #{basic_block_forward.5} parent=11 // pred_check_branch
        %120 = sbr.rel (%p118) target = $region16
      $region15: #{basic_block_forward.5} parent=11 // pred_region
        _
      $region16: #{basic_block_forward.5} parent=11 // pred_fallthru
        _
      // Predicated region
      $region17: #{basic_block_forward.5} parent=11 // pred_check
        %p121 = pneg %p77
      $region18: #{basic_block_forward.5} parent=11 // pred_check_branch
        %123 = sbr.rel (%p121) target = $region20
      $region19: #{basic_block_forward.5} parent=11 // pred_region
        _
      $region20: #{basic_block_forward.5} parent=11 // pred_fallthru
        _
    $region12: #{basic_block_forward.5} parent=5 // pred_fallthru
      _
    %p124 = scmp.lt.s32.totalorder %s9, 4
    // Predicated region
    $region21: #{basic_block_forward.5} parent=5 // pred_check
      %p125 = pneg %p124
    $region22: #{basic_block_forward.5} parent=5 // pred_check_branch
      %127 = sbr.rel (%p125) target = $region24
    $region23: #{basic_block_forward.5} parent=5 // pred_region
      // Predicated region
      $region25: #{basic_block_forward.5} parent=23 // pred_check
        %p128 = pneg %p29
      $region26: #{basic_block_forward.5} parent=23 // pred_check_branch
        %130 = sbr.rel (%p128) target = $region28
      $region27: #{basic_block_forward.5} parent=23 // pred_region
        %p131 = scmp.lt.s32.totalorder %s9, 3
        %s132 = scalar_select %p131, %s9, 3
        %s133 = smul.addr %s132, 18
        %s134 = smul.addr %s133, 8
        %s135 = scalar_lea.vmem %s0, %s134
      $region28: #{basic_block_forward.5} parent=23 // pred_fallthru
        _
    $region24: #{basic_block_forward.5} parent=5 // pred_fallthru
      _
    %p136 = scmp.le.s32.totalorder 1, %s9
    %p137 = scmp.lt.s32.totalorder %s9, 5
    %p138 = pnand %p136, %p137
    %p139 = pneg %p138
    // Predicated region
    $region29: #{basic_block_forward.5} parent=5 // pred_check
      _
    $region30: #{basic_block_forward.5} parent=5 // pred_check_branch
      %141 = sbr.rel (%p138) target = $region32
    $region31: #{basic_block_forward.5} parent=5 // pred_region
      %s142 = ssub.s32 %s9, 1
      %p143 = scmp.lt.s32.totalorder %s14, 3
      %s144 = scalar_select %p143, %s14, 3
      %s145 = smul.addr %s144, 18
      %s146 = smul.addr %s145, 8
      %s147 = scalar_lea.vmem %s0, %s146
      %p148 = pneg %p35
      %p149 = pneg %p32
      %p150 = pneg %p56
      %p151 = pneg %p53
      %p152 = pneg %p77
      %p153 = pneg %p74
      %p154 = pneg %p103
      %p155 = pneg %p100
      %p156 = scmp.lt.s32.totalorder %s14, 3
      %s157 = scalar_select %p156, %s14, 3
      %s158 = smul.addr %s157, 18
      %s159 = smul.addr %s158, 8
      %s160 = scalar_lea.vmem %s3, %s159
      %p161 = scmp.lt.s32.totalorder %s14, 3
      %s162 = scalar_select %p161, %s14, 3
      %s163 = smul.addr %s162, 18
      %s164 = smul.addr %s163, 8
      %s165 = scalar_lea.vmem %s0, %s164
      %p166 = scmp.lt.s32.totalorder %s14, 3
      %s167 = scalar_select %p166, %s14, 3
      %s168 = smul.addr %s167, 18
      %s169 = smul.addr %s168, 8
      %s170 = scalar_lea.vmem %s3, %s169
      %v171 = vld [vmem:[%s165] sm:$0xff]
      %v172 = vld [vmem:[%s165 + $0x8] sm:$0xff]
      %v173 = vld [vmem:[%s165 + $0x10] sm:$0xff]
      %v174 = vld [vmem:[%s165 + $0x18] sm:$0xff]
      %v175 = vld [vmem:[%s165 + $0x20] sm:$0xff]
      %v176 = vld [vmem:[%s165 + $0x28] sm:$0xff]
      %v177 = vld [vmem:[%s165 + $0x30] sm:$0xff]
      %v178 = vld [vmem:[%s165 + $0x38] sm:$0xff]
      %v179 = vld [vmem:[%s165 + $0x40] sm:$0xff]
      %v180 = vld [vmem:[%s165 + $0x48] sm:$0xff]
      %v181 = vld [vmem:[%s165 + $0x50] sm:$0xff]
      %v182 = vld [vmem:[%s165 + $0x58] sm:$0xff]
      %v183 = vld [vmem:[%s165 + $0x60] sm:$0xff]
      %v184 = vld [vmem:[%s165 + $0x68] sm:$0xff]
      %v185 = vld [vmem:[%s165 + $0x70] sm:$0xff]
      %v186 = vld [vmem:[%s165 + $0x78] sm:$0xff]
      %v187 = vld [vmem:[%s165 + $0x80] sm:$0xff]
      %v188 = vld [vmem:[%s165 + $0x88] sm:$0xff]
      %v189 = vld [vmem:[%s1] sm:$0x1]
      %v191 = vperm.slane %v189, 0
      %v193 = vmul.f32 %v171, %v191
      %v194 = vmul.f32 %v172, %v191
      %v195 = vmul.f32 %v173, %v191
      %v196 = vmul.f32 %v174, %v191
      %v197 = vmul.f32 %v175, %v191
      %v198 = vmul.f32 %v176, %v191
      %v199 = vmul.f32 %v177, %v191
      %v200 = vmul.f32 %v178, %v191
      %v201 = vmul.f32 %v179, %v191
      %v202 = vmul.f32 %v180, %v191
      %v203 = vmul.f32 %v181, %v191
      %v204 = vmul.f32 %v182, %v191
      %v205 = vmul.f32 %v183, %v191
      %v206 = vmul.f32 %v184, %v191
      %v207 = vmul.f32 %v185, %v191
      %v208 = vmul.f32 %v186, %v191
      %v209 = vmul.f32 %v187, %v191
      %v210 = vmul.f32 %v188, %v191
      %v211 = vld [vmem:[%s2] sm:$0x1]
      %v213 = vperm.slane %v211, 0
      %v215 = vadd.f32 %v193, %v213
      %v216 = vadd.f32 %v194, %v213
      %v217 = vadd.f32 %v195, %v213
      %v218 = vadd.f32 %v196, %v213
      %v219 = vadd.f32 %v197, %v213
      %v220 = vadd.f32 %v198, %v213
      %v221 = vadd.f32 %v199, %v213
      %v222 = vadd.f32 %v200, %v213
      %v223 = vadd.f32 %v201, %v213
      %v224 = vadd.f32 %v202, %v213
      %v225 = vadd.f32 %v203, %v213
      %v226 = vadd.f32 %v204, %v213
      %v227 = vadd.f32 %v205, %v213
      %v228 = vadd.f32 %v206, %v213
      %v229 = vadd.f32 %v207, %v213
      %v230 = vadd.f32 %v208, %v213
      %v231 = vadd.f32 %v209, %v213
      %v232 = vadd.f32 %v210, %v213
      %v233 = vmax.f32 %v215, 0.0
      %v234 = vmax.f32 %v216, 0.0
      %v235 = vmax.f32 %v217, 0.0
      %v236 = vmax.f32 %v218, 0.0
      %v237 = vmax.f32 %v219, 0.0
      %v238 = vmax.f32 %v220, 0.0
      %v239 = vmax.f32 %v221, 0.0
      %v240 = vmax.f32 %v222, 0.0
      %v241 = vmax.f32 %v223, 0.0
      %v242 = vmax.f32 %v224, 0.0
      %v243 = vmax.f32 %v225, 0.0
      %v244 = vmax.f32 %v226, 0.0
      %v245 = vmax.f32 %v227, 0.0
      %v246 = vmax.f32 %v228, 0.0
      %v247 = vmax.f32 %v229, 0.0
      %v248 = vmax.f32 %v230, 0.0
      %v249 = vmax.f32 %v231, 0.0
      %v250 = vmax.f32 %v232, 0.0
      %251 = vst [vmem:[%s170] sm:$0xff] %v233
      %252 = vst [vmem:[%s170 + $0x8] sm:$0xff] %v234
      %253 = vst [vmem:[%s170 + $0x10] sm:$0xff] %v235
      %254 = vst [vmem:[%s170 + $0x18] sm:$0xff] %v236
      %255 = vst [vmem:[%s170 + $0x20] sm:$0xff] %v237
      %256 = vst [vmem:[%s170 + $0x28] sm:$0xff] %v238
      %257 = vst [vmem:[%s170 + $0x30] sm:$0xff] %v239
      %258 = vst [vmem:[%s170 + $0x38] sm:$0xff] %v240
      %259 = vst [vmem:[%s170 + $0x40] sm:$0xff] %v241
      %260 = vst [vmem:[%s170 + $0x48] sm:$0xff] %v242
      %261 = vst [vmem:[%s170 + $0x50] sm:$0xff] %v243
      %262 = vst [vmem:[%s170 + $0x58] sm:$0xff] %v244
      %263 = vst [vmem:[%s170 + $0x60] sm:$0xff] %v245
      %264 = vst [vmem:[%s170 + $0x68] sm:$0xff] %v246
      %265 = vst [vmem:[%s170 + $0x70] sm:$0xff] %v247
      %266 = vst [vmem:[%s170 + $0x78] sm:$0xff] %v248
      %267 = vst [vmem:[%s170 + $0x80] sm:$0xff] %v249
      %268 = vst [vmem:[%s170 + $0x88] sm:$0xff] %v250
      %p269 = scmp.lt.s32.totalorder %s14, 3
      %s270 = scalar_select %p269, %s14, 3
      %s271 = smul.addr %s270, 18
      %s272 = smul.addr %s271, 8
      %s273 = scalar_lea.vmem %s3, %s272
      // Predicated region
      $region33: #{basic_block_forward.5} parent=31 // pred_check
        %p274 = pneg %p100
      $region34: #{basic_block_forward.5} parent=31 // pred_check_branch
        %276 = sbr.rel (%p274) target = $region36
      $region35: #{basic_block_forward.5} parent=31 // pred_region
        _
      $region36: #{basic_block_forward.5} parent=31 // pred_fallthru
        _
    $region32: #{basic_block_forward.5} parent=5 // pred_fallthru
      _
    %p277 = scmp.le.s32.totalorder 2, %s9
    // Predicated region
    $region37: #{basic_block_forward.5} parent=5 // pred_check
      %p278 = pneg %p277
    $region38: #{basic_block_forward.5} parent=5 // pred_check_branch
      %280 = sbr.rel (%p278) target = $region40
    $region39: #{basic_block_forward.5} parent=5 // pred_region
      %s281 = ssub.s32 %s9, 2
      // Predicated region
      $region41: #{basic_block_forward.5} parent=39 // pred_check
        %p282 = pneg %p106
      $region42: #{basic_block_forward.5} parent=39 // pred_check_branch
        %284 = sbr.rel (%p282) target = $region44
      $region43: #{basic_block_forward.5} parent=39 // pred_region
        %p285 = scmp.lt.s32.totalorder %s15, 3
        %s286 = scalar_select %p285, %s15, 3
        %s287 = smul.addr %s286, 18
        %s288 = smul.addr %s287, 8
        %s289 = scalar_lea.vmem %s3, %s288
      $region44: #{basic_block_forward.5} parent=39 // pred_fallthru
        _
    $region40: #{basic_block_forward.5} parent=5 // pred_fallthru
      _
  $region6: #{basic_block_forward.5} parent=0 // loop_footer
    %s13 = sadd.s32 1, %s9
  $region7: #{basic_block_forward.5} parent=0 // loop_footer_branch
    %8 = sbr.rel target = $region3
  $region8: #{basic_block_forward.5} parent=0 // loop_exit
    _

// kernel: basic_block_forward.4
$region0: #{basic_block_forward.4}
  #allocation0 [shape = 'u32[]', space=smem, size = 0x4, offset = 0x4, fixed_abs, tag = 'smem constant byte address 0x4 - core index']
  #allocation1 [shape = 'u32[72,128]{1,0:T(1,128)}', space=vmem, size = 0x9000, scoped, tag = 'internal scratch']
  %s0 = inlined_call_operand.vmem [shape: f32[4,182,128], index: 0, kind: input, shape index: {}]
  %s1 = inlined_call_operand.vmem [shape: bf16[1152,128], index: 1, kind: input, shape index: {}]
  %s2 = inlined_call_operand.vmem [shape: f32[144,1], index: 2, kind: input, shape index: {}]
  %s3 = inlined_call_operand.vmem [shape: f32[4,144,128], index: 3, kind: output, shape index: {0}]
  %s4 = inlined_call_operand.vmem [shape: f32[4,1,128], index: 4, kind: output, shape index: {1}]
  %s5 = inlined_call_operand.vmem [shape: f32[4,1,128], index: 5, kind: output, shape index: {2}]
  %6 = xla_tuple %s3, %s4, %s5
  %s7 = sld [smem:[#allocation0]]
  $region61: #{basic_block_forward.4} parent=0
    _
  %s9 = ssub.s32 1, %s7
  %s10 = scalar_select 0, %s9, %s7
  loop: start=0, step=1, limit=6
  $region2: #{basic_block_forward.4} parent=0 // loop_pre_header
    _
  $region3: #{basic_block_forward.4} parent=0 // loop_header
    %s12 = sphi 0, %s16
    %p13 = scmp.ge.s32.totalorder %s12, 6
    %s22 = sphi 0, %s24
    %s25 = sphi 0, %s22
    %s26 = sphi 0, %s25
    %s42 = sphi 0, %s26
    %s46 = sphi 0, %s46
    %s48 = sphi 0, %s46
    %s49 = sphi 0, %s48
    %s63 = sphi 0, %s49
    %s67 = sphi 0, %s67
    %s69 = sphi 0, %s67
    %s70 = sphi 0, %s69
    %s84 = sphi 0, %s70
    %s90 = sphi 0, %s92
    %s93 = sphi 0, %s90
    %s94 = sphi 0, %s93
    %s110 = sphi 0, %s94
    %s116 = sphi 0, %s118
    %s119 = sphi 0, %s116
    %s120 = sphi 0, %s119
    %s136 = sphi 0, %s120
    %s142 = sphi 0, %s144
    %s145 = sphi 0, %s142
    %s146 = sphi 0, %s145
    %s162 = sphi 0, %s146
  $region4: #{basic_block_forward.4} parent=0 // loop_header_branch
    %15 = sbr.rel (%p13) target = $region8
  $region5: #{basic_block_forward.4} parent=0 // loop_body
    %s17 = ssub.s32 %s12, 1
    %s18 = ssub.s32 %s12, 2
    %s19 = sadd.s32 %s12, 1
    %s20 = ssub.s32 %s12, %s19
    %p21 = scmp.eq.s32.totalorder %s20, 0
    %s23 = sadd.s32 %s22, 1
    %s24 = scalar_select %p21, %s22, %s23
    %p27 = pneg %p21
    %p28 = scmp.eq.s32.totalorder %s12, 3
    %p29 = por %p27, %p28
    %p30 = scmp.ne.s32.totalorder %s22, %s25
    %p31 = scmp.eq.s32.totalorder %s12, 0
    %p32 = por %p30, %p31
    %p33 = scmp.ne.s32.totalorder %s22, %s25
    %p34 = scmp.eq.s32.totalorder %s17, 3
    %p35 = por %p33, %p34
    %p36 = scmp.ne.s32.totalorder %s25, %s26
    %p37 = scmp.eq.s32.totalorder %s17, 0
    %p38 = por %p36, %p37
    %p39 = scmp.ne.s32.totalorder %s25, %s26
    %p40 = scmp.eq.s32.totalorder %s18, 3
    %p41 = por %p39, %p40
    %p43 = scmp.ne.s32.totalorder %s26, %s42
    %p44 = scmp.eq.s32.totalorder %s18, 0
    %p45 = por %p43, %p44
    %s47 = sadd.s32 %s46, 1
    %p50 = scmp.eq.s32.totalorder %s12, 3
    %p51 = scmp.ne.s32.totalorder %s46, %s48
    %p52 = scmp.eq.s32.totalorder %s12, 0
    %p53 = por %p51, %p52
    %p54 = scmp.ne.s32.totalorder %s46, %s48
    %p55 = scmp.eq.s32.totalorder %s17, 3
    %p56 = por %p54, %p55
    %p57 = scmp.ne.s32.totalorder %s48, %s49
    %p58 = scmp.eq.s32.totalorder %s17, 0
    %p59 = por %p57, %p58
    %p60 = scmp.ne.s32.totalorder %s48, %s49
    %p61 = scmp.eq.s32.totalorder %s18, 3
    %p62 = por %p60, %p61
    %p64 = scmp.ne.s32.totalorder %s49, %s63
    %p65 = scmp.eq.s32.totalorder %s18, 0
    %p66 = por %p64, %p65
    %s68 = sadd.s32 %s67, 1
    %p71 = scmp.eq.s32.totalorder %s12, 3
    %p72 = scmp.ne.s32.totalorder %s67, %s69
    %p73 = scmp.eq.s32.totalorder %s12, 0
    %p74 = por %p72, %p73
    %p75 = scmp.ne.s32.totalorder %s67, %s69
    %p76 = scmp.eq.s32.totalorder %s17, 3
    %p77 = por %p75, %p76
    %p78 = scmp.ne.s32.totalorder %s69, %s70
    %p79 = scmp.eq.s32.totalorder %s17, 0
    %p80 = por %p78, %p79
    %p81 = scmp.ne.s32.totalorder %s69, %s70
    %p82 = scmp.eq.s32.totalorder %s18, 3
    %p83 = por %p81, %p82
    %p85 = scmp.ne.s32.totalorder %s70, %s84
    %p86 = scmp.eq.s32.totalorder %s18, 0
    %p87 = por %p85, %p86
    %s88 = ssub.s32 %s12, %s19
    %p89 = scmp.eq.s32.totalorder %s88, 0
    %s91 = sadd.s32 %s90, 1
    %s92 = scalar_select %p89, %s90, %s91
    %p95 = pneg %p89
    %p96 = scmp.eq.s32.totalorder %s12, 3
    %p97 = por %p95, %p96
    %p98 = scmp.ne.s32.totalorder %s90, %s93
    %p99 = scmp.eq.s32.totalorder %s12, 0
    %p100 = por %p98, %p99
    %p101 = scmp.ne.s32.totalorder %s90, %s93
    %p102 = scmp.eq.s32.totalorder %s17, 3
    %p103 = por %p101, %p102
    %p104 = scmp.ne.s32.totalorder %s93, %s94
    %p105 = scmp.eq.s32.totalorder %s17, 0
    %p106 = por %p104, %p105
    %p107 = scmp.ne.s32.totalorder %s93, %s94
    %p108 = scmp.eq.s32.totalorder %s18, 3
    %p109 = por %p107, %p108
    %p111 = scmp.ne.s32.totalorder %s94, %s110
    %p112 = scmp.eq.s32.totalorder %s18, 0
    %p113 = por %p111, %p112
    %s114 = ssub.s32 %s12, %s19
    %p115 = scmp.eq.s32.totalorder %s114, 0
    %s117 = sadd.s32 %s116, 1
    %s118 = scalar_select %p115, %s116, %s117
    %p121 = pneg %p115
    %p122 = scmp.eq.s32.totalorder %s12, 3
    %p123 = por %p121, %p122
    %p124 = scmp.ne.s32.totalorder %s116, %s119
    %p125 = scmp.eq.s32.totalorder %s12, 0
    %p126 = por %p124, %p125
    %p127 = scmp.ne.s32.totalorder %s116, %s119
    %p128 = scmp.eq.s32.totalorder %s17, 3
    %p129 = por %p127, %p128
    %p130 = scmp.ne.s32.totalorder %s119, %s120
    %p131 = scmp.eq.s32.totalorder %s17, 0
    %p132 = por %p130, %p131
    %p133 = scmp.ne.s32.totalorder %s119, %s120
    %p134 = scmp.eq.s32.totalorder %s18, 3
    %p135 = por %p133, %p134
    %p137 = scmp.ne.s32.totalorder %s120, %s136
    %p138 = scmp.eq.s32.totalorder %s18, 0
    %p139 = por %p137, %p138
    %s140 = ssub.s32 %s12, %s19
    %p141 = scmp.eq.s32.totalorder %s140, 0
    %s143 = sadd.s32 %s142, 1
    %s144 = scalar_select %p141, %s142, %s143
    %p147 = pneg %p141
    %p148 = scmp.eq.s32.totalorder %s12, 3
    %p149 = por %p147, %p148
    %p150 = scmp.ne.s32.totalorder %s142, %s145
    %p151 = scmp.eq.s32.totalorder %s12, 0
    %p152 = por %p150, %p151
    %p153 = scmp.ne.s32.totalorder %s142, %s145
    %p154 = scmp.eq.s32.totalorder %s17, 3
    %p155 = por %p153, %p154
    %p156 = scmp.ne.s32.totalorder %s145, %s146
    %p157 = scmp.eq.s32.totalorder %s17, 0
    %p158 = por %p156, %p157
    %p159 = scmp.ne.s32.totalorder %s145, %s146
    %p160 = scmp.eq.s32.totalorder %s18, 3
    %p161 = por %p159, %p160
    %p163 = scmp.ne.s32.totalorder %s146, %s162
    %p164 = scmp.eq.s32.totalorder %s18, 0
    %p165 = por %p163, %p164
    %p166 = scmp.le.s32.totalorder 1, %s12
    %p167 = scmp.lt.s32.totalorder %s12, 5
    %p168 = pnand %p166, %p167
    %p169 = pneg %p168
    // Predicated region
    $region9: #{basic_block_forward.4} parent=5 // pred_check
      _
    $region10: #{basic_block_forward.4} parent=5 // pred_check_branch
      %171 = sbr.rel (%p168) target = $region12
    $region11: #{basic_block_forward.4} parent=5 // pred_region
      %s172 = ssub.s32 %s12, 1
      // Predicated region
      $region13: #{basic_block_forward.4} parent=11 // pred_check
        %p173 = pneg %p59
      $region14: #{basic_block_forward.4} parent=11 // pred_check_branch
        %175 = sbr.rel (%p173) target = $region16
      $region15: #{basic_block_forward.4} parent=11 // pred_region
        _
      $region16: #{basic_block_forward.4} parent=11 // pred_fallthru
        _
      // Predicated region
      $region17: #{basic_block_forward.4} parent=11 // pred_check
        %p176 = pneg %p80
      $region18: #{basic_block_forward.4} parent=11 // pred_check_branch
        %178 = sbr.rel (%p176) target = $region20
      $region19: #{basic_block_forward.4} parent=11 // pred_region
        _
      $region20: #{basic_block_forward.4} parent=11 // pred_fallthru
        _
    $region12: #{basic_block_forward.4} parent=5 // pred_fallthru
      _
    %p179 = scmp.lt.s32.totalorder %s12, 4
    // Predicated region
    $region21: #{basic_block_forward.4} parent=5 // pred_check
      %p180 = pneg %p179
    $region22: #{basic_block_forward.4} parent=5 // pred_check_branch
      %182 = sbr.rel (%p180) target = $region24
    $region23: #{basic_block_forward.4} parent=5 // pred_region
      // Predicated region
      $region25: #{basic_block_forward.4} parent=23 // pred_check
        %p183 = pneg %p32
      $region26: #{basic_block_forward.4} parent=23 // pred_check_branch
        %185 = sbr.rel (%p183) target = $region28
      $region27: #{basic_block_forward.4} parent=23 // pred_region
        %p186 = scmp.lt.s32.totalorder %s12, 3
        %s187 = scalar_select %p186, %s12, 3
        %s188 = smul.addr %s187, 23
        %s189 = smul.addr %s188, 8
        %s190 = scalar_lea.vmem %s0, %s189
      $region28: #{basic_block_forward.4} parent=23 // pred_fallthru
        _
    $region24: #{basic_block_forward.4} parent=5 // pred_fallthru
      _
    %p191 = scmp.le.s32.totalorder 1, %s12
    %p192 = scmp.lt.s32.totalorder %s12, 5
    %p193 = pnand %p191, %p192
    %p194 = pneg %p193
    // Predicated region
    $region29: #{basic_block_forward.4} parent=5 // pred_check
      _
    $region30: #{basic_block_forward.4} parent=5 // pred_check_branch
      %196 = sbr.rel (%p193) target = $region32
    $region31: #{basic_block_forward.4} parent=5 // pred_region
      %s197 = ssub.s32 %s12, 1
      %p198 = scmp.lt.s32.totalorder %s17, 3
      %s199 = scalar_select %p198, %s17, 3
      %s200 = smul.addr %s199, 23
      %s201 = smul.addr %s200, 8
      %s202 = scalar_lea.vmem %s0, %s201
      %p203 = pneg %p38
      %p204 = pneg %p35
      %p205 = pneg %p59
      %p206 = pneg %p56
      %p207 = pneg %p80
      %p208 = pneg %p77
      %p209 = pneg %p106
      %p210 = pneg %p103
      %p211 = scmp.lt.s32.totalorder %s17, 3
      %s212 = scalar_select %p211, %s17, 3
      %s213 = smul.addr %s212, 18
      %s214 = smul.addr %s213, 8
      %s215 = scalar_lea.vmem %s3, %s214
      %p216 = pneg %p132
      %p217 = pneg %p129
      %p218 = scmp.lt.s32.totalorder %s17, 3
      %s219 = scalar_select %p218, %s17, 3
      %s220 = scalar_lea.vmem %s4, %s219
      %p221 = pneg %p158
      %p222 = pneg %p155
      %p223 = scmp.lt.s32.totalorder %s17, 3
      %s224 = scalar_select %p223, %s17, 3
      %s225 = scalar_lea.vmem %s5, %s224
      %p226 = scmp.lt.s32.totalorder %s17, 3
      %s227 = scalar_select %p226, %s17, 3
      %s228 = smul.addr %s227, 23
      %s229 = smul.addr %s228, 8
      %s230 = scalar_lea.vmem %s0, %s229
      %p231 = scmp.lt.s32.totalorder %s17, 3
      %s232 = scalar_select %p231, %s17, 3
      %s233 = smul.addr %s232, 18
      %s234 = smul.addr %s233, 8
      %s235 = scalar_lea.vmem %s3, %s234
      %p236 = scmp.lt.s32.totalorder %s17, 3
      %s237 = scalar_select %p236, %s17, 3
      %s238 = scalar_lea.vmem %s4, %s237
      %p239 = scmp.lt.s32.totalorder %s17, 3
      %s240 = scalar_select %p239, %s17, 3
      %s241 = scalar_lea.vmem %s5, %s240
      %v242 = vld [vmem:[%s230] sm:$0xff]
      %v243 = vld [vmem:[%s230 + $0x8] sm:$0xff]
      %v244 = vld [vmem:[%s230 + $0x10] sm:$0xff]
      %v245 = vld [vmem:[%s230 + $0x18] sm:$0xff]
      %v246 = vld [vmem:[%s230 + $0x20] sm:$0xff]
      %v247 = vld [vmem:[%s230 + $0x28] sm:$0xff]
      %v248 = vld [vmem:[%s230 + $0x30] sm:$0xff]
      %v249 = vld [vmem:[%s230 + $0x38] sm:$0xff]
      %v250 = vld [vmem:[%s230 + $0x40] sm:$0xff]
      %v251 = vld [vmem:[%s230 + $0x48] sm:$0xff]
      %v252 = vld [vmem:[%s230 + $0x50] sm:$0xff]
      %v253 = vld [vmem:[%s230 + $0x58] sm:$0xff]
      %v254 = vld [vmem:[%s230 + $0x60] sm:$0xff]
      %v255 = vld [vmem:[%s230 + $0x68] sm:$0xff]
      %v256 = vld [vmem:[%s230 + $0x70] sm:$0xff]
      %v257 = vld [vmem:[%s230 + $0x78] sm:$0xff]
      %v258 = vld [vmem:[%s230 + $0x80] sm:$0xff]
      %v259 = vld [vmem:[%s230 + $0x88] sm:$0xff]
      %v260 = vld [vmem:[%s230 + $0x90] sm:$0xff]
      %v261 = vld [vmem:[%s230 + $0x98] sm:$0xff]
      %v262 = vld [vmem:[%s230 + $0xa0] sm:$0xff]
      %v263 = vld [vmem:[%s230 + $0xa8] sm:$0xff]
      %v264 = vld [vmem:[%s230 + $0xb0] sm:$0x3f]
      %v265 = vpack.c.bf16 %v242, %v242
      %v266 = vpack.c.bf16 %v243, %v243
      %v267 = vpack.c.bf16 %v244, %v244
      %v268 = vpack.c.bf16 %v245, %v245
      %v269 = vpack.c.bf16 %v246, %v246
      %v270 = vpack.c.bf16 %v247, %v247
      %v271 = vpack.c.bf16 %v248, %v248
      %v272 = vpack.c.bf16 %v249, %v249
      %v273 = vpack.c.bf16 %v250, %v250
      %v274 = vpack.c.bf16 %v251, %v251
      %v275 = vpack.c.bf16 %v252, %v252
      %v276 = vpack.c.bf16 %v253, %v253
      %v277 = vpack.c.bf16 %v254, %v254
      %v278 = vpack.c.bf16 %v255, %v255
      %v279 = vpack.c.bf16 %v256, %v256
      %v280 = vpack.c.bf16 %v257, %v257
      %v281 = vpack.c.bf16 %v258, %v258
      %v282 = vpack.c.bf16 %v259, %v259
      %v283 = vpack.c.bf16 %v260, %v260
      %v284 = vpack.c.bf16 %v261, %v261
      %v285 = vpack.c.bf16 %v262, %v262
      %v286 = vpack.c.bf16 %v263, %v263
      %v287 = vpack.c.bf16 %v264, %v264
      %v306 = vunpack.c.l.b16 %v265
      %v307 = vunpack.c.l.b16 %v266
      %v308 = vunpack.c.l.b16 %v267
      %v309 = vunpack.c.l.b16 %v268
      %v310 = vunpack.c.l.b16 %v269
      %v311 = vunpack.c.l.b16 %v270
      %v312 = vunpack.c.l.b16 %v271
      %v313 = vunpack.c.l.b16 %v272
      %v314 = vunpack.c.l.b16 %v273
      %v315 = vunpack.c.l.b16 %v274
      %v316 = vunpack.c.l.b16 %v275
      %v317 = vunpack.c.l.b16 %v276
      %v318 = vunpack.c.l.b16 %v277
      %v319 = vunpack.c.l.b16 %v278
      %v320 = vunpack.c.l.b16 %v279
      %v321 = vunpack.c.l.b16 %v280
      %v322 = vunpack.c.l.b16 %v281
      %v323 = vunpack.c.l.b16 %v282
      %v324 = vpack.c.b16 %v307, %v306
      %v325 = vpack.c.b16 %v309, %v308
      %v326 = vpack.c.b16 %v311, %v310
      %v327 = vpack.c.b16 %v313, %v312
      %v328 = vpack.c.b16 %v315, %v314
      %v329 = vpack.c.b16 %v317, %v316
      %v330 = vpack.c.b16 %v319, %v318
      %v331 = vpack.c.b16 %v321, %v320
      %v332 = vpack.c.b16 %v323, %v322
      %v343 = vunpack.c.l.b16 %v283
      %v344 = vpack.c.b16 %v343, %v343
      %vm345 = vsmask.f32 7424
      %v347 = vshrl.u32 %v324, 16
      %v349 = vshll.u32 %v324, 16
      %v351 = vrot.slane %v349, 1
      %v352 = vor.u32 %v347, %v351
      %v354 = vshll.u32 %v325, 16
      %v356 = vrot.slane %v354, 1
      %v357 = vsel %vm345, %v352, %v356
      %v358 = vshrl.u32 %v325, 16
      %v360 = vor.u32 %v358, %v356
      %v362 = vshll.u32 %v326, 16
      %v364 = vrot.slane %v362, 1
      %v365 = vsel %vm345, %v360, %v364
      %v366 = vshrl.u32 %v326, 16
      %v368 = vor.u32 %v366, %v364
      %v370 = vshll.u32 %v327, 16
      %v372 = vrot.slane %v370, 1
      %v373 = vsel %vm345, %v368, %v372
      %v374 = vshrl.u32 %v327, 16
      %v376 = vor.u32 %v374, %v372
      %v378 = vshll.u32 %v328, 16
      %v380 = vrot.slane %v378, 1
      %v381 = vsel %vm345, %v376, %v380
      %v382 = vshrl.u32 %v328, 16
      %v384 = vor.u32 %v382, %v380
      %v386 = vshll.u32 %v329, 16
      %v388 = vrot.slane %v386, 1
      %v389 = vsel %vm345, %v384, %v388
      %v390 = vshrl.u32 %v329, 16
      %v392 = vor.u32 %v390, %v388
      %v394 = vshll.u32 %v330, 16
      %v396 = vrot.slane %v394, 1
      %v397 = vsel %vm345, %v392, %v396
      %v398 = vshrl.u32 %v330, 16
      %v400 = vor.u32 %v398, %v396
      %v402 = vshll.u32 %v331, 16
      %v404 = vrot.slane %v402, 1
      %v405 = vsel %vm345, %v400, %v404
      %v406 = vshrl.u32 %v331, 16
      %v408 = vor.u32 %v406, %v404
      %v410 = vshll.u32 %v332, 16
      %v412 = vrot.slane %v410, 1
      %v413 = vsel %vm345, %v408, %v412
      %v414 = vshrl.u32 %v332, 16
      %v416 = vor.u32 %v414, %v412
      %v418 = vshll.u32 %v344, 16
      %v420 = vrot.slane %v418, 1
      %v421 = vsel %vm345, %v416, %v420
      %vm431 = vcmask 1046528
      %v432 = vrot.slane %v324, 1
      %v433 = vrot.slane %v325, 1
      %v434 = vsel %vm431, %v432, %v433
      %v435 = vrot.slane %v326, 1
      %v436 = vsel %vm431, %v433, %v435
      %v437 = vrot.slane %v327, 1
      %v438 = vsel %vm431, %v435, %v437
      %v439 = vrot.slane %v328, 1
      %v440 = vsel %vm431, %v437, %v439
      %v441 = vrot.slane %v329, 1
      %v442 = vsel %vm431, %v439, %v441
      %v443 = vrot.slane %v330, 1
      %v444 = vsel %vm431, %v441, %v443
      %v445 = vrot.slane %v331, 1
      %v446 = vsel %vm431, %v443, %v445
      %v447 = vrot.slane %v332, 1
      %v448 = vsel %vm431, %v445, %v447
      %v449 = vrot.slane %v344, 1
      %v450 = vsel %vm431, %v447, %v449
      %v462 = vunpack.c.l.b16 %v284
      %v463 = vunpack.c.l.b16 %v285
      %v464 = vpack.c.b16 %v462, %v343
      %v465 = vpack.c.b16 %v463, %v463
      %v466 = vrot.slane %v464, 1
      %v467 = vsel %vm431, %v447, %v466
      %v468 = vrot.slane %v465, 1
      %v469 = vsel %vm431, %v466, %v468
      %vm472 = vsmask.f32 6400
      %v473 = vrot.slane %v358, 1
      %v474 = vrot.slane %v354, 2
      %v475 = vor.u32 %v473, %v474
      %v476 = vrot.slane %v366, 1
      %v477 = vrot.slane %v362, 2
      %v478 = vor.u32 %v476, %v477
      %v479 = vsel %vm472, %v475, %v478
      %v480 = vrot.slane %v374, 1
      %v481 = vrot.slane %v370, 2
      %v482 = vor.u32 %v480, %v481
      %v483 = vsel %vm472, %v478, %v482
      %v484 = vrot.slane %v382, 1
      %v485 = vrot.slane %v378, 2
      %v486 = vor.u32 %v484, %v485
      %v487 = vsel %vm472, %v482, %v486
      %v488 = vrot.slane %v390, 1
      %v489 = vrot.slane %v386, 2
      %v490 = vor.u32 %v488, %v489
      %v491 = vsel %vm472, %v486, %v490
      %v492 = vrot.slane %v398, 1
      %v493 = vrot.slane %v394, 2
      %v494 = vor.u32 %v492, %v493
      %v495 = vsel %vm472, %v490, %v494
      %v496 = vrot.slane %v406, 1
      %v497 = vrot.slane %v402, 2
      %v498 = vor.u32 %v496, %v497
      %v499 = vsel %vm472, %v494, %v498
      %v500 = vrot.slane %v414, 1
      %v501 = vrot.slane %v410, 2
      %v502 = vor.u32 %v500, %v501
      %v503 = vsel %vm472, %v498, %v502
      %v505 = vshrl.u32 %v464, 16
      %v507 = vrot.slane %v505, 1
      %v508 = vshll.u32 %v464, 16
      %v510 = vrot.slane %v508, 2
      %v511 = vor.u32 %v507, %v510
      %v512 = vsel %vm472, %v502, %v511
      %v514 = vshrl.u32 %v465, 16
      %v516 = vrot.slane %v514, 1
      %v517 = vshll.u32 %v465, 16
      %v519 = vrot.slane %v517, 2
      %v520 = vor.u32 %v516, %v519
      %v521 = vsel %vm472, %v511, %v520
      %vm531 = vcmask 1045504
      %v532 = vrot.slane %v325, 2
      %v533 = vrot.slane %v326, 2
      %v534 = vsel %vm531, %v532, %v533
      %v535 = vrot.slane %v327, 2
      %v536 = vsel %vm531, %v533, %v535
      %v537 = vrot.slane %v328, 2
      %v538 = vsel %vm531, %v535, %v537
      %v539 = vrot.slane %v329, 2
      %v540 = vsel %vm531, %v537, %v539
      %v541 = vrot.slane %v330, 2
      %v542 = vsel %vm531, %v539, %v541
      %v543 = vrot.slane %v331, 2
      %v544 = vsel %vm531, %v541, %v543
      %v545 = vrot.slane %v332, 2
      %v546 = vsel %vm531, %v543, %v545
      %v547 = vrot.slane %v464, 2
      %v548 = vsel %vm531, %v545, %v547
      %v549 = vrot.slane %v465, 2
      %v550 = vsel %vm531, %v547, %v549
      %v562 = vunpack.c.l.b16 %v286
      %v563 = vunpack.c.l.b16 %v287
      %v564 = vpack.c.b16 %v562, %v463
      %v565 = vpack.c.b16 %v563, %v563
      %v566 = vrot.slane %v564, 2
      %v567 = vsel %vm531, %v547, %v566
      %v568 = vrot.slane %v565, 2
      %v569 = vsel %vm531, %v566, %v568
      %vm572 = vsmask.f32 5376
      %v573 = vrot.slane %v366, 2
      %v574 = vrot.slane %v362, 3
      %v575 = vor.u32 %v573, %v574
      %v576 = vrot.slane %v374, 2
      %v577 = vrot.slane %v370, 3
      %v578 = vor.u32 %v576, %v577
      %v579 = vsel %vm572, %v575, %v578
      %v580 = vrot.slane %v382, 2
      %v581 = vrot.slane %v378, 3
      %v582 = vor.u32 %v580, %v581
      %v583 = vsel %vm572, %v578, %v582
      %v584 = vrot.slane %v390, 2
      %v585 = vrot.slane %v386, 3
      %v586 = vor.u32 %v584, %v585
      %v587 = vsel %vm572, %v582, %v586
      %v588 = vrot.slane %v398, 2
      %v589 = vrot.slane %v394, 3
      %v590 = vor.u32 %v588, %v589
      %v591 = vsel %vm572, %v586, %v590
      %v592 = vrot.slane %v406, 2
      %v593 = vrot.slane %v402, 3
      %v594 = vor.u32 %v592, %v593
      %v595 = vsel %vm572, %v590, %v594
      %v596 = vrot.slane %v414, 2
      %v597 = vrot.slane %v410, 3
      %v598 = vor.u32 %v596, %v597
      %v599 = vsel %vm572, %v594, %v598
      %v600 = vrot.slane %v505, 2
      %v601 = vrot.slane %v508, 3
      %v602 = vor.u32 %v600, %v601
      %v603 = vsel %vm572, %v598, %v602
      %v605 = vshrl.u32 %v564, 16
      %v607 = vrot.slane %v605, 2
      %v608 = vshll.u32 %v564, 16
      %v610 = vrot.slane %v608, 3
      %v611 = vor.u32 %v607, %v610
      %v612 = vsel %vm572, %v602, %v611
      %v614 = vshrl.u32 %v565, 16
      %v616 = vrot.slane %v614, 2
      %v617 = vshll.u32 %v565, 16
      %v619 = vrot.slane %v617, 3
      %v620 = vor.u32 %v616, %v619
      %v621 = vsel %vm572, %v611, %v620
      %vm631 = vcmask 1044480
      %v632 = vrot.slane %v326, 3
      %v633 = vrot.slane %v327, 3
      %v634 = vsel %vm631, %v632, %v633
      %v635 = vrot.slane %v328, 3
      %v636 = vsel %vm631, %v633, %v635
      %v637 = vrot.slane %v329, 3
      %v638 = vsel %vm631, %v635, %v637
      %v639 = vrot.slane %v330, 3
      %v640 = vsel %vm631, %v637, %v639
      %v641 = vrot.slane %v331, 3
      %v642 = vsel %vm631, %v639, %v641
      %v643 = vrot.slane %v332, 3
      %v644 = vsel %vm631, %v641, %v643
      %v645 = vrot.slane %v464, 3
      %v646 = vsel %vm631, %v643, %v645
      %v647 = vrot.slane %v564, 3
      %v648 = vsel %vm631, %v645, %v647
      %v649 = vrot.slane %v565, 3
      %v650 = vsel %vm631, %v647, %v649
      %v660 = vld [vmem:[%s1] sm:$0xf]
      %v661 = vld [vmem:[%s1 + $0x4] sm:$0xf]
      %v662 = vld [vmem:[%s1 + $0x8] sm:$0xf]
      %v663 = vld [vmem:[%s1 + $0xc] sm:$0xf]
      %v664 = vld [vmem:[%s1 + $0x10] sm:$0xf]
      %v665 = vld [vmem:[%s1 + $0x14] sm:$0xf]
      %v666 = vld [vmem:[%s1 + $0x18] sm:$0xf]
      %v667 = vld [vmem:[%s1 + $0x1c] sm:$0xf]
      %v668 = vld [vmem:[%s1 + $0x20] sm:$0xf]
      %v669 = vld [vmem:[%s1 + $0x24] sm:$0xf]
      %v670 = vld [vmem:[%s1 + $0x28] sm:$0xf]
      %v671 = vld [vmem:[%s1 + $0x2c] sm:$0xf]
      %v672 = vld [vmem:[%s1 + $0x30] sm:$0xf]
      %v673 = vld [vmem:[%s1 + $0x34] sm:$0xf]
      %v674 = vld [vmem:[%s1 + $0x38] sm:$0xf]
      %v675 = vld [vmem:[%s1 + $0x3c] sm:$0xf]
      %v676 = vld [vmem:[%s1 + $0x40] sm:$0xf]
      %v677 = vld [vmem:[%s1 + $0x44] sm:$0xf]
      %v678 = vld [vmem:[%s1 + $0x48] sm:$0xf]
      %v679 = vld [vmem:[%s1 + $0x4c] sm:$0xf]
      %v680 = vld [vmem:[%s1 + $0x50] sm:$0xf]
      %v681 = vld [vmem:[%s1 + $0x54] sm:$0xf]
      %v682 = vld [vmem:[%s1 + $0x58] sm:$0xf]
      %v683 = vld [vmem:[%s1 + $0x5c] sm:$0xf]
      %v684 = vld [vmem:[%s1 + $0x60] sm:$0xf]
      %v685 = vld [vmem:[%s1 + $0x64] sm:$0xf]
      %v686 = vld [vmem:[%s1 + $0x68] sm:$0xf]
      %v687 = vld [vmem:[%s1 + $0x6c] sm:$0xf]
      %v688 = vld [vmem:[%s1 + $0x70] sm:$0xf]
      %v689 = vld [vmem:[%s1 + $0x74] sm:$0xf]
      %v690 = vld [vmem:[%s1 + $0x78] sm:$0xf]
      %v691 = vld [vmem:[%s1 + $0x7c] sm:$0xf]
      %v692 = vld [vmem:[%s1 + $0x80] sm:$0xf]
      %v693 = vld [vmem:[%s1 + $0x84] sm:$0xf]
      %v694 = vld [vmem:[%s1 + $0x88] sm:$0xf]
      %v695 = vld [vmem:[%s1 + $0x8c] sm:$0xf]
      %v696 = vld [vmem:[%s1 + $0x90] sm:$0xf]
      %v697 = vld [vmem:[%s1 + $0x94] sm:$0xf]
      %v698 = vld [vmem:[%s1 + $0x98] sm:$0xf]
      %v699 = vld [vmem:[%s1 + $0x9c] sm:$0xf]
      %v700 = vld [vmem:[%s1 + $0xa0] sm:$0xf]
      %v701 = vld [vmem:[%s1 + $0xa4] sm:$0xf]
      %v702 = vld [vmem:[%s1 + $0xa8] sm:$0xf]
      %v703 = vld [vmem:[%s1 + $0xac] sm:$0xf]
      %v704 = vld [vmem:[%s1 + $0xb0] sm:$0xf]
      %v705 = vld [vmem:[%s1 + $0xb4] sm:$0xf]
      %v706 = vld [vmem:[%s1 + $0xb8] sm:$0xf]
      %v707 = vld [vmem:[%s1 + $0xbc] sm:$0xf]
      %v708 = vld [vmem:[%s1 + $0xc0] sm:$0xf]
      %v709 = vld [vmem:[%s1 + $0xc4] sm:$0xf]
      %v710 = vld [vmem:[%s1 + $0xc8] sm:$0xf]
      %v711 = vld [vmem:[%s1 + $0xcc] sm:$0xf]
      %v712 = vld [vmem:[%s1 + $0xd0] sm:$0xf]
      %v713 = vld [vmem:[%s1 + $0xd4] sm:$0xf]
      %v714 = vld [vmem:[%s1 + $0xd8] sm:$0xf]
      %v715 = vld [vmem:[%s1 + $0xdc] sm:$0xf]
      %v716 = vld [vmem:[%s1 + $0xe0] sm:$0xf]
      %v717 = vld [vmem:[%s1 + $0xe4] sm:$0xf]
      %v718 = vld [vmem:[%s1 + $0xe8] sm:$0xf]
      %v719 = vld [vmem:[%s1 + $0xec] sm:$0xf]
      %v720 = vld [vmem:[%s1 + $0xf0] sm:$0xf]
      %v721 = vld [vmem:[%s1 + $0xf4] sm:$0xf]
      %v722 = vld [vmem:[%s1 + $0xf8] sm:$0xf]
      %v723 = vld [vmem:[%s1 + $0xfc] sm:$0xf]
      %v724 = vld [vmem:[%s1 + $0x100] sm:$0xf]
      %v725 = vld [vmem:[%s1 + $0x104] sm:$0xf]
      %v726 = vld [vmem:[%s1 + $0x108] sm:$0xf]
      %v727 = vld [vmem:[%s1 + $0x10c] sm:$0xf]
      %v728 = vld [vmem:[%s1 + $0x110] sm:$0xf]
      %v729 = vld [vmem:[%s1 + $0x114] sm:$0xf]
      %v730 = vld [vmem:[%s1 + $0x118] sm:$0xf]
      %v731 = vld [vmem:[%s1 + $0x11c] sm:$0xf]
      %v732 = vld [vmem:[%s1 + $0x120] sm:$0xf]
      %v733 = vld [vmem:[%s1 + $0x124] sm:$0xf]
      %v734 = vld [vmem:[%s1 + $0x128] sm:$0xf]
      %v735 = vld [vmem:[%s1 + $0x12c] sm:$0xf]
      %v736 = vld [vmem:[%s1 + $0x130] sm:$0xf]
      %v737 = vld [vmem:[%s1 + $0x134] sm:$0xf]
      %v738 = vld [vmem:[%s1 + $0x138] sm:$0xf]
      %v739 = vld [vmem:[%s1 + $0x13c] sm:$0xf]
      %v740 = vld [vmem:[%s1 + $0x140] sm:$0xf]
      %v741 = vld [vmem:[%s1 + $0x144] sm:$0xf]
      %v742 = vld [vmem:[%s1 + $0x148] sm:$0xf]
      %v743 = vld [vmem:[%s1 + $0x14c] sm:$0xf]
      %v744 = vld [vmem:[%s1 + $0x150] sm:$0xf]
      %v745 = vld [vmem:[%s1 + $0x154] sm:$0xf]
      %v746 = vld [vmem:[%s1 + $0x158] sm:$0xf]
      %v747 = vld [vmem:[%s1 + $0x15c] sm:$0xf]
      %v748 = vld [vmem:[%s1 + $0x160] sm:$0xf]
      %v749 = vld [vmem:[%s1 + $0x164] sm:$0xf]
      %v750 = vld [vmem:[%s1 + $0x168] sm:$0xf]
      %v751 = vld [vmem:[%s1 + $0x16c] sm:$0xf]
      %v752 = vld [vmem:[%s1 + $0x170] sm:$0xf]
      %v753 = vld [vmem:[%s1 + $0x174] sm:$0xf]
      %v754 = vld [vmem:[%s1 + $0x178] sm:$0xf]
      %v755 = vld [vmem:[%s1 + $0x17c] sm:$0xf]
      %v756 = vld [vmem:[%s1 + $0x180] sm:$0xf]
      %v757 = vld [vmem:[%s1 + $0x184] sm:$0xf]
      %v758 = vld [vmem:[%s1 + $0x188] sm:$0xf]
      %v759 = vld [vmem:[%s1 + $0x18c] sm:$0xf]
      %v760 = vld [vmem:[%s1 + $0x190] sm:$0xf]
      %v761 = vld [vmem:[%s1 + $0x194] sm:$0xf]
      %v762 = vld [vmem:[%s1 + $0x198] sm:$0xf]
      %v763 = vld [vmem:[%s1 + $0x19c] sm:$0xf]
      %v764 = vld [vmem:[%s1 + $0x1a0] sm:$0xf]
      %v765 = vld [vmem:[%s1 + $0x1a4] sm:$0xf]
      %v766 = vld [vmem:[%s1 + $0x1a8] sm:$0xf]
      %v767 = vld [vmem:[%s1 + $0x1ac] sm:$0xf]
      %v768 = vld [vmem:[%s1 + $0x1b0] sm:$0xf]
      %v769 = vld [vmem:[%s1 + $0x1b4] sm:$0xf]
      %v770 = vld [vmem:[%s1 + $0x1b8] sm:$0xf]
      %v771 = vld [vmem:[%s1 + $0x1bc] sm:$0xf]
      %v772 = vld [vmem:[%s1 + $0x1c0] sm:$0xf]
      %v773 = vld [vmem:[%s1 + $0x1c4] sm:$0xf]
      %v774 = vld [vmem:[%s1 + $0x1c8] sm:$0xf]
      %v775 = vld [vmem:[%s1 + $0x1cc] sm:$0xf]
      %v776 = vld [vmem:[%s1 + $0x1d0] sm:$0xf]
      %v777 = vld [vmem:[%s1 + $0x1d4] sm:$0xf]
      %v778 = vld [vmem:[%s1 + $0x1d8] sm:$0xf]
      %v779 = vld [vmem:[%s1 + $0x1dc] sm:$0xf]
      %v780 = vld [vmem:[%s1 + $0x1e0] sm:$0xf]
      %v781 = vld [vmem:[%s1 + $0x1e4] sm:$0xf]
      %v782 = vld [vmem:[%s1 + $0x1e8] sm:$0xf]
      %v783 = vld [vmem:[%s1 + $0x1ec] sm:$0xf]
      %v784 = vld [vmem:[%s1 + $0x1f0] sm:$0xf]
      %v785 = vld [vmem:[%s1 + $0x1f4] sm:$0xf]
      %v786 = vld [vmem:[%s1 + $0x1f8] sm:$0xf]
      %v787 = vld [vmem:[%s1 + $0x1fc] sm:$0xf]
      %v788 = vld [vmem:[%s1 + $0x200] sm:$0xf]
      %v789 = vld [vmem:[%s1 + $0x204] sm:$0xf]
      %v790 = vld [vmem:[%s1 + $0x208] sm:$0xf]
      %v791 = vld [vmem:[%s1 + $0x20c] sm:$0xf]
      %v792 = vld [vmem:[%s1 + $0x210] sm:$0xf]
      %v793 = vld [vmem:[%s1 + $0x214] sm:$0xf]
      %v794 = vld [vmem:[%s1 + $0x218] sm:$0xf]
      %v795 = vld [vmem:[%s1 + $0x21c] sm:$0xf]
      %v796 = vld [vmem:[%s1 + $0x220] sm:$0xf]
      %v797 = vld [vmem:[%s1 + $0x224] sm:$0xf]
      %v798 = vld [vmem:[%s1 + $0x228] sm:$0xf]
      %v799 = vld [vmem:[%s1 + $0x22c] sm:$0xf]
      %v800 = vld [vmem:[%s1 + $0x230] sm:$0xf]
      %v801 = vld [vmem:[%s1 + $0x234] sm:$0xf]
      %v802 = vld [vmem:[%s1 + $0x238] sm:$0xf]
      %v803 = vld [vmem:[%s1 + $0x23c] sm:$0xf]
      %v948 = vunpack.c.l.b16 %v660
      %v949 = vunpack.c.l.b16 %v661
      %v950 = vunpack.c.l.b16 %v662
      %v951 = vunpack.c.l.b16 %v663
      %v952 = vunpack.c.l.b16 %v664
      %v953 = vunpack.c.l.b16 %v665
      %v954 = vunpack.c.l.b16 %v666
      %v955 = vunpack.c.l.b16 %v667
      %v956 = vunpack.c.l.b16 %v668
      %v957 = vunpack.c.l.b16 %v669
      %v958 = vunpack.c.l.b16 %v670
      %v959 = vunpack.c.l.b16 %v671
      %v960 = vunpack.c.l.b16 %v672
      %v961 = vunpack.c.l.b16 %v673
      %v962 = vunpack.c.l.b16 %v674
      %v963 = vunpack.c.l.b16 %v675
      %v964 = vunpack.c.l.b16 %v676
      %v965 = vunpack.c.l.b16 %v677
      %v966 = vunpack.c.l.b16 %v678
      %v967 = vunpack.c.l.b16 %v679
      %v968 = vunpack.c.l.b16 %v680
      %v969 = vunpack.c.l.b16 %v681
      %v970 = vunpack.c.l.b16 %v682
      %v971 = vunpack.c.l.b16 %v683
      %v972 = vunpack.c.l.b16 %v684
      %v973 = vunpack.c.l.b16 %v685
      %v974 = vunpack.c.l.b16 %v686
      %v975 = vunpack.c.l.b16 %v687
      %v976 = vunpack.c.l.b16 %v688
      %v977 = vunpack.c.l.b16 %v689
      %v978 = vunpack.c.l.b16 %v690
      %v979 = vunpack.c.l.b16 %v691
      %v980 = vunpack.c.l.b16 %v692
      %v981 = vunpack.c.l.b16 %v693
      %v982 = vunpack.c.l.b16 %v694
      %v983 = vunpack.c.l.b16 %v695
      %v984 = vunpack.c.l.b16 %v696
      %v985 = vunpack.c.l.b16 %v697
      %v986 = vunpack.c.l.b16 %v698
      %v987 = vunpack.c.l.b16 %v699
      %v988 = vunpack.c.l.b16 %v700
      %v989 = vunpack.c.l.b16 %v701
      %v990 = vunpack.c.l.b16 %v702
      %v991 = vunpack.c.l.b16 %v703
      %v992 = vunpack.c.l.b16 %v704
      %v993 = vunpack.c.l.b16 %v705
      %v994 = vunpack.c.l.b16 %v706
      %v995 = vunpack.c.l.b16 %v707
      %v996 = vunpack.c.l.b16 %v708
      %v997 = vunpack.c.l.b16 %v709
      %v998 = vunpack.c.l.b16 %v710
      %v999 = vunpack.c.l.b16 %v711
      %v1000 = vunpack.c.l.b16 %v712
      %v1001 = vunpack.c.l.b16 %v713
      %v1002 = vunpack.c.l.b16 %v714
      %v1003 = vunpack.c.l.b16 %v715
      %v1004 = vunpack.c.l.b16 %v716
      %v1005 = vunpack.c.l.b16 %v717
      %v1006 = vunpack.c.l.b16 %v718
      %v1007 = vunpack.c.l.b16 %v719
      %v1008 = vunpack.c.l.b16 %v720
      %v1009 = vunpack.c.l.b16 %v721
      %v1010 = vunpack.c.l.b16 %v722
      %v1011 = vunpack.c.l.b16 %v723
      %v1012 = vunpack.c.l.b16 %v724
      %v1013 = vunpack.c.l.b16 %v725
      %v1014 = vunpack.c.l.b16 %v726
      %v1015 = vunpack.c.l.b16 %v727
      %v1016 = vunpack.c.l.b16 %v728
      %v1017 = vunpack.c.l.b16 %v729
      %v1018 = vunpack.c.l.b16 %v730
      %v1019 = vunpack.c.l.b16 %v731
      %v1020 = vunpack.c.l.b16 %v732
      %v1021 = vunpack.c.l.b16 %v733
      %v1022 = vunpack.c.l.b16 %v734
      %v1023 = vunpack.c.l.b16 %v735
      %v1024 = vunpack.c.l.b16 %v736
      %v1025 = vunpack.c.l.b16 %v737
      %v1026 = vunpack.c.l.b16 %v738
      %v1027 = vunpack.c.l.b16 %v739
      %v1028 = vunpack.c.l.b16 %v740
      %v1029 = vunpack.c.l.b16 %v741
      %v1030 = vunpack.c.l.b16 %v742
      %v1031 = vunpack.c.l.b16 %v743
      %v1032 = vunpack.c.l.b16 %v744
      %v1033 = vunpack.c.l.b16 %v745
      %v1034 = vunpack.c.l.b16 %v746
      %v1035 = vunpack.c.l.b16 %v747
      %v1036 = vunpack.c.l.b16 %v748
      %v1037 = vunpack.c.l.b16 %v749
      %v1038 = vunpack.c.l.b16 %v750
      %v1039 = vunpack.c.l.b16 %v751
      %v1040 = vunpack.c.l.b16 %v752
      %v1041 = vunpack.c.l.b16 %v753
      %v1042 = vunpack.c.l.b16 %v754
      %v1043 = vunpack.c.l.b16 %v755
      %v1044 = vunpack.c.l.b16 %v756
      %v1045 = vunpack.c.l.b16 %v757
      %v1046 = vunpack.c.l.b16 %v758
      %v1047 = vunpack.c.l.b16 %v759
      %v1048 = vunpack.c.l.b16 %v760
      %v1049 = vunpack.c.l.b16 %v761
      %v1050 = vunpack.c.l.b16 %v762
      %v1051 = vunpack.c.l.b16 %v763
      %v1052 = vunpack.c.l.b16 %v764
      %v1053 = vunpack.c.l.b16 %v765
      %v1054 = vunpack.c.l.b16 %v766
      %v1055 = vunpack.c.l.b16 %v767
      %v1056 = vunpack.c.l.b16 %v768
      %v1057 = vunpack.c.l.b16 %v769
      %v1058 = vunpack.c.l.b16 %v770
      %v1059 = vunpack.c.l.b16 %v771
      %v1060 = vunpack.c.l.b16 %v772
      %v1061 = vunpack.c.l.b16 %v773
      %v1062 = vunpack.c.l.b16 %v774
      %v1063 = vunpack.c.l.b16 %v775
      %v1064 = vunpack.c.l.b16 %v776
      %v1065 = vunpack.c.l.b16 %v777
      %v1066 = vunpack.c.l.b16 %v778
      %v1067 = vunpack.c.l.b16 %v779
      %v1068 = vunpack.c.l.b16 %v780
      %v1069 = vunpack.c.l.b16 %v781
      %v1070 = vunpack.c.l.b16 %v782
      %v1071 = vunpack.c.l.b16 %v783
      %v1072 = vunpack.c.l.b16 %v784
      %v1073 = vunpack.c.l.b16 %v785
      %v1074 = vunpack.c.l.b16 %v786
      %v1075 = vunpack.c.l.b16 %v787
      %v1076 = vunpack.c.l.b16 %v788
      %v1077 = vunpack.c.l.b16 %v789
      %v1078 = vunpack.c.l.b16 %v790
      %v1079 = vunpack.c.l.b16 %v791
      %v1080 = vunpack.c.l.b16 %v792
      %v1081 = vunpack.c.l.b16 %v793
      %v1082 = vunpack.c.l.b16 %v794
      %v1083 = vunpack.c.l.b16 %v795
      %v1084 = vunpack.c.l.b16 %v796
      %v1085 = vunpack.c.l.b16 %v797
      %v1086 = vunpack.c.l.b16 %v798
      %v1087 = vunpack.c.l.b16 %v799
      %v1088 = vunpack.c.l.b16 %v800
      %v1089 = vunpack.c.l.b16 %v801
      %v1090 = vunpack.c.l.b16 %v802
      %v1091 = vunpack.c.l.b16 %v803
      %v1092 = vpack.c.b16 %v949, %v948
      %v1093 = vpack.c.b16 %v951, %v950
      %v1094 = vpack.c.b16 %v953, %v952
      %v1095 = vpack.c.b16 %v955, %v954
      %v1096 = vpack.c.b16 %v957, %v956
      %v1097 = vpack.c.b16 %v959, %v958
      %v1098 = vpack.c.b16 %v961, %v960
      %v1099 = vpack.c.b16 %v963, %v962
      %v1100 = vpack.c.b16 %v965, %v964
      %v1101 = vpack.c.b16 %v967, %v966
      %v1102 = vpack.c.b16 %v969, %v968
      %v1103 = vpack.c.b16 %v971, %v970
      %v1104 = vpack.c.b16 %v973, %v972
      %v1105 = vpack.c.b16 %v975, %v974
      %v1106 = vpack.c.b16 %v977, %v976
      %v1107 = vpack.c.b16 %v979, %v978
      %v1108 = vpack.c.b16 %v981, %v980
      %v1109 = vpack.c.b16 %v983, %v982
      %v1110 = vpack.c.b16 %v985, %v984
      %v1111 = vpack.c.b16 %v987, %v986
      %v1112 = vpack.c.b16 %v989, %v988
      %v1113 = vpack.c.b16 %v991, %v990
      %v1114 = vpack.c.b16 %v993, %v992
      %v1115 = vpack.c.b16 %v995, %v994
      %v1116 = vpack.c.b16 %v997, %v996
      %v1117 = vpack.c.b16 %v999, %v998
      %v1118 = vpack.c.b16 %v1001, %v1000
      %v1119 = vpack.c.b16 %v1003, %v1002
      %v1120 = vpack.c.b16 %v1005, %v1004
      %v1121 = vpack.c.b16 %v1007, %v1006
      %v1122 = vpack.c.b16 %v1009, %v1008
      %v1123 = vpack.c.b16 %v1011, %v1010
      %v1124 = vpack.c.b16 %v1013, %v1012
      %v1125 = vpack.c.b16 %v1015, %v1014
      %v1126 = vpack.c.b16 %v1017, %v1016
      %v1127 = vpack.c.b16 %v1019, %v1018
      %v1128 = vpack.c.b16 %v1021, %v1020
      %v1129 = vpack.c.b16 %v1023, %v1022
      %v1130 = vpack.c.b16 %v1025, %v1024
      %v1131 = vpack.c.b16 %v1027, %v1026
      %v1132 = vpack.c.b16 %v1029, %v1028
      %v1133 = vpack.c.b16 %v1031, %v1030
      %v1134 = vpack.c.b16 %v1033, %v1032
      %v1135 = vpack.c.b16 %v1035, %v1034
      %v1136 = vpack.c.b16 %v1037, %v1036
      %v1137 = vpack.c.b16 %v1039, %v1038
      %v1138 = vpack.c.b16 %v1041, %v1040
      %v1139 = vpack.c.b16 %v1043, %v1042
      %v1140 = vpack.c.b16 %v1045, %v1044
      %v1141 = vpack.c.b16 %v1047, %v1046
      %v1142 = vpack.c.b16 %v1049, %v1048
      %v1143 = vpack.c.b16 %v1051, %v1050
      %v1144 = vpack.c.b16 %v1053, %v1052
      %v1145 = vpack.c.b16 %v1055, %v1054
      %v1146 = vpack.c.b16 %v1057, %v1056
      %v1147 = vpack.c.b16 %v1059, %v1058
      %v1148 = vpack.c.b16 %v1061, %v1060
      %v1149 = vpack.c.b16 %v1063, %v1062
      %v1150 = vpack.c.b16 %v1065, %v1064
      %v1151 = vpack.c.b16 %v1067, %v1066
      %v1152 = vpack.c.b16 %v1069, %v1068
      %v1153 = vpack.c.b16 %v1071, %v1070
      %v1154 = vpack.c.b16 %v1073, %v1072
      %v1155 = vpack.c.b16 %v1075, %v1074
      %v1156 = vpack.c.b16 %v1077, %v1076
      %v1157 = vpack.c.b16 %v1079, %v1078
      %v1158 = vpack.c.b16 %v1081, %v1080
      %v1159 = vpack.c.b16 %v1083, %v1082
      %v1160 = vpack.c.b16 %v1085, %v1084
      %v1161 = vpack.c.b16 %v1087, %v1086
      %v1162 = vpack.c.b16 %v1089, %v1088
      %v1163 = vpack.c.b16 %v1091, %v1090
      %1236 = vmatpush.bf16.msra.mxu0 %v1099
      %1237 = vmatpush.bf16.msra.mxu0 %v1098
      %1238 = vmatpush.bf16.msra.mxu0 %v1097
      %1239 = vmatpush.bf16.msra.mxu0 %v1096
      %1240 = vmatpush.bf16.msra.mxu0 %v1095
      %1241 = vmatpush.bf16.msra.mxu0 %v1094
      %1242 = vmatpush.bf16.msra.mxu0 %v1093
      %1243 = vmatpush.bf16.msra.mxu0 %v1092
      %1244 = vmatmul.bf16.gmra.mxu0 %v324
      %v1245 = vpop.f32.mrf.mxu0
      %v1246 = vadd.f32 0.0, %v1245
      %v1247 = vpop.f32.mrf.mxu0
      %v1248 = vadd.f32 0.0, %v1247
      %1249 = vmatmul.bf16.gmra.mxu0 %v325
      %v1250 = vpop.f32.mrf.mxu0
      %v1251 = vadd.f32 0.0, %v1250
      %v1252 = vpop.f32.mrf.mxu0
      %v1253 = vadd.f32 0.0, %v1252
      %1254 = vmatmul.bf16.gmra.mxu0 %v326
      %v1255 = vpop.f32.mrf.mxu0
      %v1256 = vadd.f32 0.0, %v1255
      %v1257 = vpop.f32.mrf.mxu0
      %v1258 = vadd.f32 0.0, %v1257
      %1259 = vmatmul.bf16.gmra.mxu0 %v327
      %v1260 = vpop.f32.mrf.mxu0
      %v1261 = vadd.f32 0.0, %v1260
      %v1262 = vpop.f32.mrf.mxu0
      %v1263 = vadd.f32 0.0, %v1262
      %1264 = vmatmul.bf16.gmra.mxu0 %v328
      %v1265 = vpop.f32.mrf.mxu0
      %v1266 = vadd.f32 0.0, %v1265
      %v1267 = vpop.f32.mrf.mxu0
      %v1268 = vadd.f32 0.0, %v1267
      %1269 = vmatmul.bf16.gmra.mxu0 %v329
      %v1270 = vpop.f32.mrf.mxu0
      %v1271 = vadd.f32 0.0, %v1270
      %v1272 = vpop.f32.mrf.mxu0
      %v1273 = vadd.f32 0.0, %v1272
      %1274 = vmatmul.bf16.gmra.mxu0 %v330
      %v1275 = vpop.f32.mrf.mxu0
      %v1276 = vadd.f32 0.0, %v1275
      %v1277 = vpop.f32.mrf.mxu0
      %v1278 = vadd.f32 0.0, %v1277
      %1279 = vmatmul.bf16.gmra.mxu0 %v331
      %v1280 = vpop.f32.mrf.mxu0
      %v1281 = vadd.f32 0.0, %v1280
      %v1282 = vpop.f32.mrf.mxu0
      %v1283 = vadd.f32 0.0, %v1282
      %1284 = vmatmul.bf16.gmra.mxu0 %v332
      %v1285 = vpop.f32.mrf.mxu0
      %v1286 = vadd.f32 0.0, %v1285
      %v1287 = vpop.f32.mrf.mxu0
      %v1288 = vadd.f32 0.0, %v1287
      %1289 = vdwg.mxu0
      %1290 = vmatpush.bf16.msra.mxu0 %v1107
      %1291 = vmatpush.bf16.msra.mxu0 %v1106
      %1292 = vmatpush.bf16.msra.mxu0 %v1105
      %1293 = vmatpush.bf16.msra.mxu0 %v1104
      %1294 = vmatpush.bf16.msra.mxu0 %v1103
      %1295 = vmatpush.bf16.msra.mxu0 %v1102
      %1296 = vmatpush.bf16.msra.mxu0 %v1101
      %1297 = vmatpush.bf16.msra.mxu0 %v1100
      %1298 = vmatmul.bf16.gmra.mxu0 %v357
      %v1299 = vpop.f32.mrf.mxu0
      %v1300 = vadd.f32 %v1246, %v1299
      %v1301 = vpop.f32.mrf.mxu0
      %v1302 = vadd.f32 %v1248, %v1301
      %1303 = vmatmul.bf16.gmra.mxu0 %v365
      %v1304 = vpop.f32.mrf.mxu0
      %v1305 = vadd.f32 %v1251, %v1304
      %v1306 = vpop.f32.mrf.mxu0
      %v1307 = vadd.f32 %v1253, %v1306
      %1308 = vmatmul.bf16.gmra.mxu0 %v373
      %v1309 = vpop.f32.mrf.mxu0
      %v1310 = vadd.f32 %v1256, %v1309
      %v1311 = vpop.f32.mrf.mxu0
      %v1312 = vadd.f32 %v1258, %v1311
      %1313 = vmatmul.bf16.gmra.mxu0 %v381
      %v1314 = vpop.f32.mrf.mxu0
      %v1315 = vadd.f32 %v1261, %v1314
      %v1316 = vpop.f32.mrf.mxu0
      %v1317 = vadd.f32 %v1263, %v1316
      %1318 = vmatmul.bf16.gmra.mxu0 %v389
      %v1319 = vpop.f32.mrf.mxu0
      %v1320 = vadd.f32 %v1266, %v1319
      %v1321 = vpop.f32.mrf.mxu0
      %v1322 = vadd.f32 %v1268, %v1321
      %1323 = vmatmul.bf16.gmra.mxu0 %v397
      %v1324 = vpop.f32.mrf.mxu0
      %v1325 = vadd.f32 %v1271, %v1324
      %v1326 = vpop.f32.mrf.mxu0
      %v1327 = vadd.f32 %v1273, %v1326
      %1328 = vmatmul.bf16.gmra.mxu0 %v405
      %v1329 = vpop.f32.mrf.mxu0
      %v1330 = vadd.f32 %v1276, %v1329
      %v1331 = vpop.f32.mrf.mxu0
      %v1332 = vadd.f32 %v1278, %v1331
      %1333 = vmatmul.bf16.gmra.mxu0 %v413
      %v1334 = vpop.f32.mrf.mxu0
      %v1335 = vadd.f32 %v1281, %v1334
      %v1336 = vpop.f32.mrf.mxu0
      %v1337 = vadd.f32 %v1283, %v1336
      %1338 = vmatmul.bf16.gmra.mxu0 %v421
      %v1339 = vpop.f32.mrf.mxu0
      %v1340 = vadd.f32 %v1286, %v1339
      %v1341 = vpop.f32.mrf.mxu0
      %v1342 = vadd.f32 %v1288, %v1341
      %1343 = vdwg.mxu0
      %1344 = vmatpush.bf16.msra.mxu0 %v1115
      %1345 = vmatpush.bf16.msra.mxu0 %v1114
      %1346 = vmatpush.bf16.msra.mxu0 %v1113
      %1347 = vmatpush.bf16.msra.mxu0 %v1112
      %1348 = vmatpush.bf16.msra.mxu0 %v1111
      %1349 = vmatpush.bf16.msra.mxu0 %v1110
      %1350 = vmatpush.bf16.msra.mxu0 %v1109
      %1351 = vmatpush.bf16.msra.mxu0 %v1108
      %1352 = vmatmul.bf16.gmra.mxu0 %v434
      %v1353 = vpop.f32.mrf.mxu0
      %v1354 = vadd.f32 %v1300, %v1353
      %v1355 = vpop.f32.mrf.mxu0
      %v1356 = vadd.f32 %v1302, %v1355
      %1357 = vmatmul.bf16.gmra.mxu0 %v436
      %v1358 = vpop.f32.mrf.mxu0
      %v1359 = vadd.f32 %v1305, %v1358
      %v1360 = vpop.f32.mrf.mxu0
      %v1361 = vadd.f32 %v1307, %v1360
      %1362 = vmatmul.bf16.gmra.mxu0 %v438
      %v1363 = vpop.f32.mrf.mxu0
      %v1364 = vadd.f32 %v1310, %v1363
      %v1365 = vpop.f32.mrf.mxu0
      %v1366 = vadd.f32 %v1312, %v1365
      %1367 = vmatmul.bf16.gmra.mxu0 %v440
      %v1368 = vpop.f32.mrf.mxu0
      %v1369 = vadd.f32 %v1315, %v1368
      %v1370 = vpop.f32.mrf.mxu0
      %v1371 = vadd.f32 %v1317, %v1370
      %1372 = vmatmul.bf16.gmra.mxu0 %v442
      %v1373 = vpop.f32.mrf.mxu0
      %v1374 = vadd.f32 %v1320, %v1373
      %v1375 = vpop.f32.mrf.mxu0
      %v1376 = vadd.f32 %v1322, %v1375
      %1377 = vmatmul.bf16.gmra.mxu0 %v444
      %v1378 = vpop.f32.mrf.mxu0
      %v1379 = vadd.f32 %v1325, %v1378
      %v1380 = vpop.f32.mrf.mxu0
      %v1381 = vadd.f32 %v1327, %v1380
      %1382 = vmatmul.bf16.gmra.mxu0 %v446
      %v1383 = vpop.f32.mrf.mxu0
      %v1384 = vadd.f32 %v1330, %v1383
      %v1385 = vpop.f32.mrf.mxu0
      %v1386 = vadd.f32 %v1332, %v1385
      %1387 = vmatmul.bf16.gmra.mxu0 %v448
      %v1388 = vpop.f32.mrf.mxu0
      %v1389 = vadd.f32 %v1335, %v1388
      %v1390 = vpop.f32.mrf.mxu0
      %v1391 = vadd.f32 %v1337, %v1390
      %1392 = vmatmul.bf16.gmra.mxu0 %v450
      %v1393 = vpop.f32.mrf.mxu0
      %v1394 = vadd.f32 %v1340, %v1393
      %v1395 = vpop.f32.mrf.mxu0
      %v1396 = vadd.f32 %v1342, %v1395
      %1397 = vdwg.mxu0
      %1398 = vmatpush.bf16.msra.mxu0 %v1123
      %1399 = vmatpush.bf16.msra.mxu0 %v1122
      %1400 = vmatpush.bf16.msra.mxu0 %v1121
      %1401 = vmatpush.bf16.msra.mxu0 %v1120
      %1402 = vmatpush.bf16.msra.mxu0 %v1119
      %1403 = vmatpush.bf16.msra.mxu0 %v1118
      %1404 = vmatpush.bf16.msra.mxu0 %v1117
      %1405 = vmatpush.bf16.msra.mxu0 %v1116
      %1406 = vmatmul.bf16.gmra.mxu0 %v436
      %v1407 = vpop.f32.mrf.mxu0
      %v1408 = vadd.f32 %v1354, %v1407
      %v1409 = vpop.f32.mrf.mxu0
      %v1410 = vadd.f32 %v1356, %v1409
      %1411 = vmatmul.bf16.gmra.mxu0 %v438
      %v1412 = vpop.f32.mrf.mxu0
      %v1413 = vadd.f32 %v1359, %v1412
      %v1414 = vpop.f32.mrf.mxu0
      %v1415 = vadd.f32 %v1361, %v1414
      %1416 = vmatmul.bf16.gmra.mxu0 %v440
      %v1417 = vpop.f32.mrf.mxu0
      %v1418 = vadd.f32 %v1364, %v1417
      %v1419 = vpop.f32.mrf.mxu0
      %v1420 = vadd.f32 %v1366, %v1419
      %1421 = vmatmul.bf16.gmra.mxu0 %v442
      %v1422 = vpop.f32.mrf.mxu0
      %v1423 = vadd.f32 %v1369, %v1422
      %v1424 = vpop.f32.mrf.mxu0
      %v1425 = vadd.f32 %v1371, %v1424
      %1426 = vmatmul.bf16.gmra.mxu0 %v444
      %v1427 = vpop.f32.mrf.mxu0
      %v1428 = vadd.f32 %v1374, %v1427
      %v1429 = vpop.f32.mrf.mxu0
      %v1430 = vadd.f32 %v1376, %v1429
      %1431 = vmatmul.bf16.gmra.mxu0 %v446
      %v1432 = vpop.f32.mrf.mxu0
      %v1433 = vadd.f32 %v1379, %v1432
      %v1434 = vpop.f32.mrf.mxu0
      %v1435 = vadd.f32 %v1381, %v1434
      %1436 = vmatmul.bf16.gmra.mxu0 %v448
      %v1437 = vpop.f32.mrf.mxu0
      %v1438 = vadd.f32 %v1384, %v1437
      %v1439 = vpop.f32.mrf.mxu0
      %v1440 = vadd.f32 %v1386, %v1439
      %1441 = vmatmul.bf16.gmra.mxu0 %v467
      %v1442 = vpop.f32.mrf.mxu0
      %v1443 = vadd.f32 %v1389, %v1442
      %v1444 = vpop.f32.mrf.mxu0
      %v1445 = vadd.f32 %v1391, %v1444
      %1446 = vmatmul.bf16.gmra.mxu0 %v469
      %v1447 = vpop.f32.mrf.mxu0
      %v1448 = vadd.f32 %v1394, %v1447
      %v1449 = vpop.f32.mrf.mxu0
      %v1450 = vadd.f32 %v1396, %v1449
      %1451 = vdwg.mxu0
      %1452 = vmatpush.bf16.msra.mxu0 %v1131
      %1453 = vmatpush.bf16.msra.mxu0 %v1130
      %1454 = vmatpush.bf16.msra.mxu0 %v1129
      %1455 = vmatpush.bf16.msra.mxu0 %v1128
      %1456 = vmatpush.bf16.msra.mxu0 %v1127
      %1457 = vmatpush.bf16.msra.mxu0 %v1126
      %1458 = vmatpush.bf16.msra.mxu0 %v1125
      %1459 = vmatpush.bf16.msra.mxu0 %v1124
      %1460 = vmatmul.bf16.gmra.mxu0 %v479
      %v1461 = vpop.f32.mrf.mxu0
      %v1462 = vadd.f32 %v1408, %v1461
      %v1463 = vpop.f32.mrf.mxu0
      %v1464 = vadd.f32 %v1410, %v1463
      %1465 = vmatmul.bf16.gmra.mxu0 %v483
      %v1466 = vpop.f32.mrf.mxu0
      %v1467 = vadd.f32 %v1413, %v1466
      %v1468 = vpop.f32.mrf.mxu0
      %v1469 = vadd.f32 %v1415, %v1468
      %1470 = vmatmul.bf16.gmra.mxu0 %v487
      %v1471 = vpop.f32.mrf.mxu0
      %v1472 = vadd.f32 %v1418, %v1471
      %v1473 = vpop.f32.mrf.mxu0
      %v1474 = vadd.f32 %v1420, %v1473
      %1475 = vmatmul.bf16.gmra.mxu0 %v491
      %v1476 = vpop.f32.mrf.mxu0
      %v1477 = vadd.f32 %v1423, %v1476
      %v1478 = vpop.f32.mrf.mxu0
      %v1479 = vadd.f32 %v1425, %v1478
      %1480 = vmatmul.bf16.gmra.mxu0 %v495
      %v1481 = vpop.f32.mrf.mxu0
      %v1482 = vadd.f32 %v1428, %v1481
      %v1483 = vpop.f32.mrf.mxu0
      %v1484 = vadd.f32 %v1430, %v1483
      %1485 = vmatmul.bf16.gmra.mxu0 %v499
      %v1486 = vpop.f32.mrf.mxu0
      %v1487 = vadd.f32 %v1433, %v1486
      %v1488 = vpop.f32.mrf.mxu0
      %v1489 = vadd.f32 %v1435, %v1488
      %1490 = vmatmul.bf16.gmra.mxu0 %v503
      %v1491 = vpop.f32.mrf.mxu0
      %v1492 = vadd.f32 %v1438, %v1491
      %v1493 = vpop.f32.mrf.mxu0
      %v1494 = vadd.f32 %v1440, %v1493
      %1495 = vmatmul.bf16.gmra.mxu0 %v512
      %v1496 = vpop.f32.mrf.mxu0
      %v1497 = vadd.f32 %v1443, %v1496
      %v1498 = vpop.f32.mrf.mxu0
      %v1499 = vadd.f32 %v1445, %v1498
      %1500 = vmatmul.bf16.gmra.mxu0 %v521
      %v1501 = vpop.f32.mrf.mxu0
      %v1502 = vadd.f32 %v1448, %v1501
      %v1503 = vpop.f32.mrf.mxu0
      %v1504 = vadd.f32 %v1450, %v1503
      %1505 = vdwg.mxu0
      %1506 = vmatpush.bf16.msra.mxu0 %v1139
      %1507 = vmatpush.bf16.msra.mxu0 %v1138
      %1508 = vmatpush.bf16.msra.mxu0 %v1137
      %1509 = vmatpush.bf16.msra.mxu0 %v1136
      %1510 = vmatpush.bf16.msra.mxu0 %v1135
      %1511 = vmatpush.bf16.msra.mxu0 %v1134
      %1512 = vmatpush.bf16.msra.mxu0 %v1133
      %1513 = vmatpush.bf16.msra.mxu0 %v1132
      %1514 = vmatmul.bf16.gmra.mxu0 %v534
      %v1515 = vpop.f32.mrf.mxu0
      %v1516 = vadd.f32 %v1462, %v1515
      %v1517 = vpop.f32.mrf.mxu0
      %v1518 = vadd.f32 %v1464, %v1517
      %1519 = vmatmul.bf16.gmra.mxu0 %v536
      %v1520 = vpop.f32.mrf.mxu0
      %v1521 = vadd.f32 %v1467, %v1520
      %v1522 = vpop.f32.mrf.mxu0
      %v1523 = vadd.f32 %v1469, %v1522
      %1524 = vmatmul.bf16.gmra.mxu0 %v538
      %v1525 = vpop.f32.mrf.mxu0
      %v1526 = vadd.f32 %v1472, %v1525
      %v1527 = vpop.f32.mrf.mxu0
      %v1528 = vadd.f32 %v1474, %v1527
      %1529 = vmatmul.bf16.gmra.mxu0 %v540
      %v1530 = vpop.f32.mrf.mxu0
      %v1531 = vadd.f32 %v1477, %v1530
      %v1532 = vpop.f32.mrf.mxu0
      %v1533 = vadd.f32 %v1479, %v1532
      %1534 = vmatmul.bf16.gmra.mxu0 %v542
      %v1535 = vpop.f32.mrf.mxu0
      %v1536 = vadd.f32 %v1482, %v1535
      %v1537 = vpop.f32.mrf.mxu0
      %v1538 = vadd.f32 %v1484, %v1537
      %1539 = vmatmul.bf16.gmra.mxu0 %v544
      %v1540 = vpop.f32.mrf.mxu0
      %v1541 = vadd.f32 %v1487, %v1540
      %v1542 = vpop.f32.mrf.mxu0
      %v1543 = vadd.f32 %v1489, %v1542
      %1544 = vmatmul.bf16.gmra.mxu0 %v546
      %v1545 = vpop.f32.mrf.mxu0
      %v1546 = vadd.f32 %v1492, %v1545
      %v1547 = vpop.f32.mrf.mxu0
      %v1548 = vadd.f32 %v1494, %v1547
      %1549 = vmatmul.bf16.gmra.mxu0 %v548
      %v1550 = vpop.f32.mrf.mxu0
      %v1551 = vadd.f32 %v1497, %v1550
      %v1552 = vpop.f32.mrf.mxu0
      %v1553 = vadd.f32 %v1499, %v1552
      %1554 = vmatmul.bf16.gmra.mxu0 %v550
      %v1555 = vpop.f32.mrf.mxu0
      %v1556 = vadd.f32 %v1502, %v1555
      %v1557 = vpop.f32.mrf.mxu0
      %v1558 = vadd.f32 %v1504, %v1557
      %1559 = vdwg.mxu0
      %1560 = vmatpush.bf16.msra.mxu0 %v1147
      %1561 = vmatpush.bf16.msra.mxu0 %v1146
      %1562 = vmatpush.bf16.msra.mxu0 %v1145
      %1563 = vmatpush.bf16.msra.mxu0 %v1144
      %1564 = vmatpush.bf16.msra.mxu0 %v1143
      %1565 = vmatpush.bf16.msra.mxu0 %v1142
      %1566 = vmatpush.bf16.msra.mxu0 %v1141
      %1567 = vmatpush.bf16.msra.mxu0 %v1140
      %1568 = vmatmul.bf16.gmra.mxu0 %v536
      %v1569 = vpop.f32.mrf.mxu0
      %v1570 = vadd.f32 %v1516, %v1569
      %v1571 = vpop.f32.mrf.mxu0
      %v1572 = vadd.f32 %v1518, %v1571
      %1573 = vmatmul.bf16.gmra.mxu0 %v538
      %v1574 = vpop.f32.mrf.mxu0
      %v1575 = vadd.f32 %v1521, %v1574
      %v1576 = vpop.f32.mrf.mxu0
      %v1577 = vadd.f32 %v1523, %v1576
      %1578 = vmatmul.bf16.gmra.mxu0 %v540
      %v1579 = vpop.f32.mrf.mxu0
      %v1580 = vadd.f32 %v1526, %v1579
      %v1581 = vpop.f32.mrf.mxu0
      %v1582 = vadd.f32 %v1528, %v1581
      %1583 = vmatmul.bf16.gmra.mxu0 %v542
      %v1584 = vpop.f32.mrf.mxu0
      %v1585 = vadd.f32 %v1531, %v1584
      %v1586 = vpop.f32.mrf.mxu0
      %v1587 = vadd.f32 %v1533, %v1586
      %1588 = vmatmul.bf16.gmra.mxu0 %v544
      %v1589 = vpop.f32.mrf.mxu0
      %v1590 = vadd.f32 %v1536, %v1589
      %v1591 = vpop.f32.mrf.mxu0
      %v1592 = vadd.f32 %v1538, %v1591
      %1593 = vmatmul.bf16.gmra.mxu0 %v546
      %v1594 = vpop.f32.mrf.mxu0
      %v1595 = vadd.f32 %v1541, %v1594
      %v1596 = vpop.f32.mrf.mxu0
      %v1597 = vadd.f32 %v1543, %v1596
      %1598 = vmatmul.bf16.gmra.mxu0 %v548
      %v1599 = vpop.f32.mrf.mxu0
      %v1600 = vadd.f32 %v1546, %v1599
      %v1601 = vpop.f32.mrf.mxu0
      %v1602 = vadd.f32 %v1548, %v1601
      %1603 = vmatmul.bf16.gmra.mxu0 %v567
      %v1604 = vpop.f32.mrf.mxu0
      %v1605 = vadd.f32 %v1551, %v1604
      %v1606 = vpop.f32.mrf.mxu0
      %v1607 = vadd.f32 %v1553, %v1606
      %1608 = vmatmul.bf16.gmra.mxu0 %v569
      %v1609 = vpop.f32.mrf.mxu0
      %v1610 = vadd.f32 %v1556, %v1609
      %v1611 = vpop.f32.mrf.mxu0
      %v1612 = vadd.f32 %v1558, %v1611
      %1613 = vdwg.mxu0
      %1614 = vmatpush.bf16.msra.mxu0 %v1155
      %1615 = vmatpush.bf16.msra.mxu0 %v1154
      %1616 = vmatpush.bf16.msra.mxu0 %v1153
      %1617 = vmatpush.bf16.msra.mxu0 %v1152
      %1618 = vmatpush.bf16.msra.mxu0 %v1151
      %1619 = vmatpush.bf16.msra.mxu0 %v1150
      %1620 = vmatpush.bf16.msra.mxu0 %v1149
      %1621 = vmatpush.bf16.msra.mxu0 %v1148
      %1622 = vmatmul.bf16.gmra.mxu0 %v579
      %v1623 = vpop.f32.mrf.mxu0
      %v1624 = vadd.f32 %v1570, %v1623
      %v1625 = vpop.f32.mrf.mxu0
      %v1626 = vadd.f32 %v1572, %v1625
      %1627 = vmatmul.bf16.gmra.mxu0 %v583
      %v1628 = vpop.f32.mrf.mxu0
      %v1629 = vadd.f32 %v1575, %v1628
      %v1630 = vpop.f32.mrf.mxu0
      %v1631 = vadd.f32 %v1577, %v1630
      %1632 = vmatmul.bf16.gmra.mxu0 %v587
      %v1633 = vpop.f32.mrf.mxu0
      %v1634 = vadd.f32 %v1580, %v1633
      %v1635 = vpop.f32.mrf.mxu0
      %v1636 = vadd.f32 %v1582, %v1635
      %1637 = vmatmul.bf16.gmra.mxu0 %v591
      %v1638 = vpop.f32.mrf.mxu0
      %v1639 = vadd.f32 %v1585, %v1638
      %v1640 = vpop.f32.mrf.mxu0
      %v1641 = vadd.f32 %v1587, %v1640
      %1642 = vmatmul.bf16.gmra.mxu0 %v595
      %v1643 = vpop.f32.mrf.mxu0
      %v1644 = vadd.f32 %v1590, %v1643
      %v1645 = vpop.f32.mrf.mxu0
      %v1646 = vadd.f32 %v1592, %v1645
      %1647 = vmatmul.bf16.gmra.mxu0 %v599
      %v1648 = vpop.f32.mrf.mxu0
      %v1649 = vadd.f32 %v1595, %v1648
      %v1650 = vpop.f32.mrf.mxu0
      %v1651 = vadd.f32 %v1597, %v1650
      %1652 = vmatmul.bf16.gmra.mxu0 %v603
      %v1653 = vpop.f32.mrf.mxu0
      %v1654 = vadd.f32 %v1600, %v1653
      %v1655 = vpop.f32.mrf.mxu0
      %v1656 = vadd.f32 %v1602, %v1655
      %1657 = vmatmul.bf16.gmra.mxu0 %v612
      %v1658 = vpop.f32.mrf.mxu0
      %v1659 = vadd.f32 %v1605, %v1658
      %v1660 = vpop.f32.mrf.mxu0
      %v1661 = vadd.f32 %v1607, %v1660
      %1662 = vmatmul.bf16.gmra.mxu0 %v621
      %v1663 = vpop.f32.mrf.mxu0
      %v1664 = vadd.f32 %v1610, %v1663
      %v1665 = vpop.f32.mrf.mxu0
      %v1666 = vadd.f32 %v1612, %v1665
      %1667 = vdwg.mxu0
      %1668 = vmatpush.bf16.msra.mxu0 %v1163
      %1669 = vmatpush.bf16.msra.mxu0 %v1162
      %1670 = vmatpush.bf16.msra.mxu0 %v1161
      %1671 = vmatpush.bf16.msra.mxu0 %v1160
      %1672 = vmatpush.bf16.msra.mxu0 %v1159
      %1673 = vmatpush.bf16.msra.mxu0 %v1158
      %1674 = vmatpush.bf16.msra.mxu0 %v1157
      %1675 = vmatpush.bf16.msra.mxu0 %v1156
      %1676 = vmatmul.bf16.gmra.mxu0 %v634
      %v1677 = vpop.f32.mrf.mxu0
      %v1678 = vadd.f32 %v1624, %v1677
      %v1679 = vpop.f32.mrf.mxu0
      %v1680 = vadd.f32 %v1626, %v1679
      %1681 = vmatmul.bf16.gmra.mxu0 %v636
      %v1682 = vpop.f32.mrf.mxu0
      %v1683 = vadd.f32 %v1629, %v1682
      %v1684 = vpop.f32.mrf.mxu0
      %v1685 = vadd.f32 %v1631, %v1684
      %1686 = vmatmul.bf16.gmra.mxu0 %v638
      %v1687 = vpop.f32.mrf.mxu0
      %v1688 = vadd.f32 %v1634, %v1687
      %v1689 = vpop.f32.mrf.mxu0
      %v1690 = vadd.f32 %v1636, %v1689
      %1691 = vmatmul.bf16.gmra.mxu0 %v640
      %v1692 = vpop.f32.mrf.mxu0
      %v1693 = vadd.f32 %v1639, %v1692
      %v1694 = vpop.f32.mrf.mxu0
      %v1695 = vadd.f32 %v1641, %v1694
      %1696 = vmatmul.bf16.gmra.mxu0 %v642
      %v1697 = vpop.f32.mrf.mxu0
      %v1698 = vadd.f32 %v1644, %v1697
      %v1699 = vpop.f32.mrf.mxu0
      %v1700 = vadd.f32 %v1646, %v1699
      %1701 = vmatmul.bf16.gmra.mxu0 %v644
      %v1702 = vpop.f32.mrf.mxu0
      %v1703 = vadd.f32 %v1649, %v1702
      %v1704 = vpop.f32.mrf.mxu0
      %v1705 = vadd.f32 %v1651, %v1704
      %1706 = vmatmul.bf16.gmra.mxu0 %v646
      %v1707 = vpop.f32.mrf.mxu0
      %v1708 = vadd.f32 %v1654, %v1707
      %v1709 = vpop.f32.mrf.mxu0
      %v1710 = vadd.f32 %v1656, %v1709
      %1711 = vmatmul.bf16.gmra.mxu0 %v648
      %v1712 = vpop.f32.mrf.mxu0
      %v1713 = vadd.f32 %v1659, %v1712
      %v1714 = vpop.f32.mrf.mxu0
      %v1715 = vadd.f32 %v1661, %v1714
      %1716 = vmatmul.bf16.gmra.mxu0 %v650
      %v1717 = vpop.f32.mrf.mxu0
      %v1718 = vadd.f32 %v1664, %v1717
      %v1719 = vpop.f32.mrf.mxu0
      %v1720 = vadd.f32 %v1666, %v1719
      %1721 = vdwg.mxu0
      %v1722 = vld [vmem:[%s2] sm:$0xff]
      %v1723 = vld [vmem:[%s2 + $0x8] sm:$0xff]
      %v1724 = vld [vmem:[%s2 + $0x10] sm:$0xff]
      %v1725 = vld [vmem:[%s2 + $0x18] sm:$0xff]
      %v1726 = vld [vmem:[%s2 + $0x20] sm:$0xff]
      %v1727 = vld [vmem:[%s2 + $0x28] sm:$0xff]
      %v1728 = vld [vmem:[%s2 + $0x30] sm:$0xff]
      %v1729 = vld [vmem:[%s2 + $0x38] sm:$0xff]
      %v1730 = vld [vmem:[%s2 + $0x40] sm:$0xff]
      %v1731 = vld [vmem:[%s2 + $0x48] sm:$0xff]
      %v1732 = vld [vmem:[%s2 + $0x50] sm:$0xff]
      %v1733 = vld [vmem:[%s2 + $0x58] sm:$0xff]
      %v1734 = vld [vmem:[%s2 + $0x60] sm:$0xff]
      %v1735 = vld [vmem:[%s2 + $0x68] sm:$0xff]
      %v1736 = vld [vmem:[%s2 + $0x70] sm:$0xff]
      %v1737 = vld [vmem:[%s2 + $0x78] sm:$0xff]
      %v1738 = vld [vmem:[%s2 + $0x80] sm:$0xff]
      %v1739 = vld [vmem:[%s2 + $0x88] sm:$0xff]
      %1741 = vset.pattern.permute.xlu0 0
      %1742 = vperm.xlu0 %1741, %v1722
      %v1743 = vpop.permute.xlu0 %1742
      %1746 = vset.pattern.permute.xlu0 0
      %1747 = vperm.xlu0 %1746, %v1723
      %v1748 = vpop.permute.xlu0 %1747
      %1751 = vset.pattern.permute.xlu0 0
      %1752 = vperm.xlu0 %1751, %v1724
      %v1753 = vpop.permute.xlu0 %1752
      %1756 = vset.pattern.permute.xlu0 0
      %1757 = vperm.xlu0 %1756, %v1725
      %v1758 = vpop.permute.xlu0 %1757
      %1761 = vset.pattern.permute.xlu0 0
      %1762 = vperm.xlu0 %1761, %v1726
      %v1763 = vpop.permute.xlu0 %1762
      %1766 = vset.pattern.permute.xlu0 0
      %1767 = vperm.xlu0 %1766, %v1727
      %v1768 = vpop.permute.xlu0 %1767
      %1771 = vset.pattern.permute.xlu0 0
      %1772 = vperm.xlu0 %1771, %v1728
      %v1773 = vpop.permute.xlu0 %1772
      %1776 = vset.pattern.permute.xlu0 0
      %1777 = vperm.xlu0 %1776, %v1729
      %v1778 = vpop.permute.xlu0 %1777
      %1781 = vset.pattern.permute.xlu0 0
      %1782 = vperm.xlu0 %1781, %v1730
      %v1783 = vpop.permute.xlu0 %1782
      %1786 = vset.pattern.permute.xlu0 0
      %1787 = vperm.xlu0 %1786, %v1731
      %v1788 = vpop.permute.xlu0 %1787
      %1791 = vset.pattern.permute.xlu0 0
      %1792 = vperm.xlu0 %1791, %v1732
      %v1793 = vpop.permute.xlu0 %1792
      %1796 = vset.pattern.permute.xlu0 0
      %1797 = vperm.xlu0 %1796, %v1733
      %v1798 = vpop.permute.xlu0 %1797
      %1801 = vset.pattern.permute.xlu0 0
      %1802 = vperm.xlu0 %1801, %v1734
      %v1803 = vpop.permute.xlu0 %1802
      %1806 = vset.pattern.permute.xlu0 0
      %1807 = vperm.xlu0 %1806, %v1735
      %v1808 = vpop.permute.xlu0 %1807
      %1811 = vset.pattern.permute.xlu0 0
      %1812 = vperm.xlu0 %1811, %v1736
      %v1813 = vpop.permute.xlu0 %1812
      %1816 = vset.pattern.permute.xlu0 0
      %1817 = vperm.xlu0 %1816, %v1737
      %v1818 = vpop.permute.xlu0 %1817
      %1821 = vset.pattern.permute.xlu0 0
      %1822 = vperm.xlu0 %1821, %v1738
      %v1823 = vpop.permute.xlu0 %1822
      %1826 = vset.pattern.permute.xlu0 0
      %1827 = vperm.xlu0 %1826, %v1739
      %v1828 = vpop.permute.xlu0 %1827
      %v1830 = vmul.f32 %v1678, %v1743
      %v1831 = vmul.f32 %v1680, %v1748
      %v1832 = vmul.f32 %v1683, %v1753
      %v1833 = vmul.f32 %v1685, %v1758
      %v1834 = vmul.f32 %v1688, %v1763
      %v1835 = vmul.f32 %v1690, %v1768
      %v1836 = vmul.f32 %v1693, %v1773
      %v1837 = vmul.f32 %v1695, %v1778
      %v1838 = vmul.f32 %v1698, %v1783
      %v1839 = vmul.f32 %v1700, %v1788
      %v1840 = vmul.f32 %v1703, %v1793
      %v1841 = vmul.f32 %v1705, %v1798
      %v1842 = vmul.f32 %v1708, %v1803
      %v1843 = vmul.f32 %v1710, %v1808
      %v1844 = vmul.f32 %v1713, %v1813
      %v1845 = vmul.f32 %v1715, %v1818
      %v1846 = vmul.f32 %v1718, %v1823
      %v1847 = vmul.f32 %v1720, %v1828
      %1848 = vst [vmem:[%s235] sm:$0xff] %v1830
      %1849 = vst [vmem:[%s235 + $0x8] sm:$0xff] %v1831
      %1850 = vst [vmem:[%s235 + $0x10] sm:$0xff] %v1832
      %1851 = vst [vmem:[%s235 + $0x18] sm:$0xff] %v1833
      %1852 = vst [vmem:[%s235 + $0x20] sm:$0xff] %v1834
      %1853 = vst [vmem:[%s235 + $0x28] sm:$0xff] %v1835
      %1854 = vst [vmem:[%s235 + $0x30] sm:$0xff] %v1836
      %1855 = vst [vmem:[%s235 + $0x38] sm:$0xff] %v1837
      %1856 = vst [vmem:[%s235 + $0x40] sm:$0xff] %v1838
      %1857 = vst [vmem:[%s235 + $0x48] sm:$0xff] %v1839
      %1858 = vst [vmem:[%s235 + $0x50] sm:$0xff] %v1840
      %1859 = vst [vmem:[%s235 + $0x58] sm:$0xff] %v1841
      %1860 = vst [vmem:[%s235 + $0x60] sm:$0xff] %v1842
      %1861 = vst [vmem:[%s235 + $0x68] sm:$0xff] %v1843
      %1862 = vst [vmem:[%s235 + $0x70] sm:$0xff] %v1844
      %1863 = vst [vmem:[%s235 + $0x78] sm:$0xff] %v1845
      %1864 = vst [vmem:[%s235 + $0x80] sm:$0xff] %v1846
      %1865 = vst [vmem:[%s235 + $0x88] sm:$0xff] %v1847
      %v1866 = vadd.f32 %v1830, %v1831
      %v1867 = vadd.f32 %v1866, %v1832
      %v1868 = vadd.f32 %v1867, %v1833
      %v1869 = vadd.f32 %v1868, %v1834
      %v1870 = vadd.f32 %v1869, %v1835
      %v1871 = vadd.f32 %v1870, %v1836
      %v1872 = vadd.f32 %v1871, %v1837
      %v1873 = vadd.f32 %v1872, %v1838
      %v1874 = vadd.f32 %v1873, %v1839
      %v1875 = vadd.f32 %v1874, %v1840
      %v1876 = vadd.f32 %v1875, %v1841
      %v1877 = vadd.f32 %v1876, %v1842
      %v1878 = vadd.f32 %v1877, %v1843
      %v1879 = vadd.f32 %v1878, %v1844
      %v1880 = vadd.f32 %v1879, %v1845
      %v1881 = vadd.f32 %v1880, %v1846
      %v1882 = vadd.f32 %v1881, %v1847
      %v1883 = vrot.slane %v1882, 4
      %v1884 = vadd.f32 %v1882, %v1883
      %v1885 = vrot.slane %v1884, 2
      %v1886 = vadd.f32 %v1884, %v1885
      %v1887 = vrot.slane %v1886, 1
      %v1888 = vadd.f32 %v1886, %v1887
      %1889 = vst [vmem:[%s238] sm:$0x1] %v1888
      %v1890 = vmul.f32 %v1830, %v1830
      %v1891 = vmul.f32 %v1831, %v1831
      %v1892 = vmul.f32 %v1832, %v1832
      %v1893 = vmul.f32 %v1833, %v1833
      %v1894 = vmul.f32 %v1834, %v1834
      %v1895 = vmul.f32 %v1835, %v1835
      %v1896 = vmul.f32 %v1836, %v1836
      %v1897 = vmul.f32 %v1837, %v1837
      %v1898 = vmul.f32 %v1838, %v1838
      %v1899 = vmul.f32 %v1839, %v1839
      %v1900 = vmul.f32 %v1840, %v1840
      %v1901 = vmul.f32 %v1841, %v1841
      %v1902 = vmul.f32 %v1842, %v1842
      %v1903 = vmul.f32 %v1843, %v1843
      %v1904 = vmul.f32 %v1844, %v1844
      %v1905 = vmul.f32 %v1845, %v1845
      %v1906 = vmul.f32 %v1846, %v1846
      %v1907 = vmul.f32 %v1847, %v1847
      %v1908 = vadd.f32 %v1890, %v1891
      %v1909 = vadd.f32 %v1908, %v1892
      %v1910 = vadd.f32 %v1909, %v1893
      %v1911 = vadd.f32 %v1910, %v1894
      %v1912 = vadd.f32 %v1911, %v1895
      %v1913 = vadd.f32 %v1912, %v1896
      %v1914 = vadd.f32 %v1913, %v1897
      %v1915 = vadd.f32 %v1914, %v1898
      %v1916 = vadd.f32 %v1915, %v1899
      %v1917 = vadd.f32 %v1916, %v1900
      %v1918 = vadd.f32 %v1917, %v1901
      %v1919 = vadd.f32 %v1918, %v1902
      %v1920 = vadd.f32 %v1919, %v1903
      %v1921 = vadd.f32 %v1920, %v1904
      %v1922 = vadd.f32 %v1921, %v1905
      %v1923 = vadd.f32 %v1922, %v1906
      %v1924 = vadd.f32 %v1923, %v1907
      %v1925 = vrot.slane %v1924, 4
      %v1926 = vadd.f32 %v1924, %v1925
      %v1927 = vrot.slane %v1926, 2
      %v1928 = vadd.f32 %v1926, %v1927
      %v1929 = vrot.slane %v1928, 1
      %v1930 = vadd.f32 %v1928, %v1929
      %1931 = vst [vmem:[%s241] sm:$0x1] %v1930
      %p1932 = scmp.lt.s32.totalorder %s17, 3
      %s1933 = scalar_select %p1932, %s17, 3
      %s1934 = smul.addr %s1933, 18
      %s1935 = smul.addr %s1934, 8
      %s1936 = scalar_lea.vmem %s3, %s1935
      %p1937 = scmp.lt.s32.totalorder %s17, 3
      %s1938 = scalar_select %p1937, %s17, 3
      %s1939 = scalar_lea.vmem %s4, %s1938
      %p1940 = scmp.lt.s32.totalorder %s17, 3
      %s1941 = scalar_select %p1940, %s17, 3
      %s1942 = scalar_lea.vmem %s5, %s1941
      // Predicated region
      $region33: #{basic_block_forward.4} parent=31 // pred_check
        %p1943 = pneg %p103
      $region34: #{basic_block_forward.4} parent=31 // pred_check_branch
        %1945 = sbr.rel (%p1943) target = $region36
      $region35: #{basic_block_forward.4} parent=31 // pred_region
        _
      $region36: #{basic_block_forward.4} parent=31 // pred_fallthru
        _
      // Predicated region
      $region37: #{basic_block_forward.4} parent=31 // pred_check
        %p1946 = pneg %p129
      $region38: #{basic_block_forward.4} parent=31 // pred_check_branch
        %1948 = sbr.rel (%p1946) target = $region40
      $region39: #{basic_block_forward.4} parent=31 // pred_region
        _
      $region40: #{basic_block_forward.4} parent=31 // pred_fallthru
        _
      // Predicated region
      $region41: #{basic_block_forward.4} parent=31 // pred_check
        %p1949 = pneg %p155
      $region42: #{basic_block_forward.4} parent=31 // pred_check_branch
        %1951 = sbr.rel (%p1949) target = $region44
      $region43: #{basic_block_forward.4} parent=31 // pred_region
        _
      $region44: #{basic_block_forward.4} parent=31 // pred_fallthru
        _
    $region32: #{basic_block_forward.4} parent=5 // pred_fallthru
      _
    %p1952 = scmp.le.s32.totalorder 2, %s12
    // Predicated region
    $region45: #{basic_block_forward.4} parent=5 // pred_check
      %p1953 = pneg %p1952
    $region46: #{basic_block_forward.4} parent=5 // pred_check_branch
      %1955 = sbr.rel (%p1953) target = $region48
    $region47: #{basic_block_forward.4} parent=5 // pred_region
      %s1956 = ssub.s32 %s12, 2
      // Predicated region
      $region49: #{basic_block_forward.4} parent=47 // pred_check
        %p1957 = pneg %p109
      $region50: #{basic_block_forward.4} parent=47 // pred_check_branch
        %1959 = sbr.rel (%p1957) target = $region52
      $region51: #{basic_block_forward.4} parent=47 // pred_region
        %p1960 = scmp.lt.s32.totalorder %s18, 3
        %s1961 = scalar_select %p1960, %s18, 3
        %s1962 = smul.addr %s1961, 18
        %s1963 = smul.addr %s1962, 8
        %s1964 = scalar_lea.vmem %s3, %s1963
      $region52: #{basic_block_forward.4} parent=47 // pred_fallthru
        _
      // Predicated region
      $region53: #{basic_block_forward.4} parent=47 // pred_check
        %p1965 = pneg %p135
      $region54: #{basic_block_forward.4} parent=47 // pred_check_branch
        %1967 = sbr.rel (%p1965) target = $region56
      $region55: #{basic_block_forward.4} parent=47 // pred_region
        %p1968 = scmp.lt.s32.totalorder %s18, 3
        %s1969 = scalar_select %p1968, %s18, 3
        %s1970 = scalar_lea.vmem %s4, %s1969
      $region56: #{basic_block_forward.4} parent=47 // pred_fallthru
        _
      // Predicated region
      $region57: #{basic_block_forward.4} parent=47 // pred_check
        %p1971 = pneg %p161
      $region58: #{basic_block_forward.4} parent=47 // pred_check_branch
        %1973 = sbr.rel (%p1971) target = $region60
      $region59: #{basic_block_forward.4} parent=47 // pred_region
        %p1974 = scmp.lt.s32.totalorder %s18, 3
        %s1975 = scalar_select %p1974, %s18, 3
        %s1976 = scalar_lea.vmem %s5, %s1975
      $region60: #{basic_block_forward.4} parent=47 // pred_fallthru
        _
    $region48: #{basic_block_forward.4} parent=5 // pred_fallthru
      _
  $region6: #{basic_block_forward.4} parent=0 // loop_footer
    %s16 = sadd.s32 1, %s12
  $region7: #{basic_block_forward.4} parent=0 // loop_footer_branch
    %11 = sbr.rel target = $region3
  $region8: #{basic_block_forward.4} parent=0 // loop_exit
    _

// kernel: basic_block_forward.7
$region0: #{basic_block_forward.7}
  #allocation0 [shape = 'u32[]', space=smem, size = 0x4, offset = 0x4, fixed_abs, tag = 'smem constant byte address 0x4 - core index']
  #allocation1 [shape = 'u32[72,128]{1,0:T(1,128)}', space=vmem, size = 0x9000, scoped, tag = 'internal scratch']
  %s0 = inlined_call_operand.vmem [shape: f32[4,144,128], index: 0, kind: input, shape index: {}]
  %s1 = inlined_call_operand.vmem [shape: f32[1,128], index: 1, kind: input, shape index: {}]
  %s2 = inlined_call_operand.vmem [shape: f32[1,128], index: 2, kind: input, shape index: {}]
  %s3 = inlined_call_operand.vmem [shape: f32[4,144,128], index: 3, kind: input, shape index: {}]
  %s4 = inlined_call_operand.vmem [shape: f32[4,144,128], index: 4, kind: output, shape index: {}]
  %s5 = sld [smem:[#allocation0]]
  $region49: #{basic_block_forward.7} parent=0
    _
  %s7 = ssub.s32 1, %s5
  %s8 = scalar_select 0, %s7, %s5
  loop: start=0, step=1, limit=6
  $region2: #{basic_block_forward.7} parent=0 // loop_pre_header
    _
  $region3: #{basic_block_forward.7} parent=0 // loop_header
    %s10 = sphi 0, %s14
    %p11 = scmp.ge.s32.totalorder %s10, 6
    %s20 = sphi 0, %s22
    %s23 = sphi 0, %s20
    %s24 = sphi 0, %s23
    %s40 = sphi 0, %s24
    %s44 = sphi 0, %s44
    %s46 = sphi 0, %s44
    %s47 = sphi 0, %s46
    %s61 = sphi 0, %s47
    %s65 = sphi 0, %s65
    %s67 = sphi 0, %s65
    %s68 = sphi 0, %s67
    %s82 = sphi 0, %s68
    %s88 = sphi 0, %s90
    %s91 = sphi 0, %s88
    %s92 = sphi 0, %s91
    %s108 = sphi 0, %s92
    %s114 = sphi 0, %s116
    %s117 = sphi 0, %s114
    %s118 = sphi 0, %s117
    %s134 = sphi 0, %s118
  $region4: #{basic_block_forward.7} parent=0 // loop_header_branch
    %13 = sbr.rel (%p11) target = $region8
  $region5: #{basic_block_forward.7} parent=0 // loop_body
    %s15 = ssub.s32 %s10, 1
    %s16 = ssub.s32 %s10, 2
    %s17 = sadd.s32 %s10, 1
    %s18 = ssub.s32 %s10, %s17
    %p19 = scmp.eq.s32.totalorder %s18, 0
    %s21 = sadd.s32 %s20, 1
    %s22 = scalar_select %p19, %s20, %s21
    %p25 = pneg %p19
    %p26 = scmp.eq.s32.totalorder %s10, 3
    %p27 = por %p25, %p26
    %p28 = scmp.ne.s32.totalorder %s20, %s23
    %p29 = scmp.eq.s32.totalorder %s10, 0
    %p30 = por %p28, %p29
    %p31 = scmp.ne.s32.totalorder %s20, %s23
    %p32 = scmp.eq.s32.totalorder %s15, 3
    %p33 = por %p31, %p32
    %p34 = scmp.ne.s32.totalorder %s23, %s24
    %p35 = scmp.eq.s32.totalorder %s15, 0
    %p36 = por %p34, %p35
    %p37 = scmp.ne.s32.totalorder %s23, %s24
    %p38 = scmp.eq.s32.totalorder %s16, 3
    %p39 = por %p37, %p38
    %p41 = scmp.ne.s32.totalorder %s24, %s40
    %p42 = scmp.eq.s32.totalorder %s16, 0
    %p43 = por %p41, %p42
    %s45 = sadd.s32 %s44, 1
    %p48 = scmp.eq.s32.totalorder %s10, 3
    %p49 = scmp.ne.s32.totalorder %s44, %s46
    %p50 = scmp.eq.s32.totalorder %s10, 0
    %p51 = por %p49, %p50
    %p52 = scmp.ne.s32.totalorder %s44, %s46
    %p53 = scmp.eq.s32.totalorder %s15, 3
    %p54 = por %p52, %p53
    %p55 = scmp.ne.s32.totalorder %s46, %s47
    %p56 = scmp.eq.s32.totalorder %s15, 0
    %p57 = por %p55, %p56
    %p58 = scmp.ne.s32.totalorder %s46, %s47
    %p59 = scmp.eq.s32.totalorder %s16, 3
    %p60 = por %p58, %p59
    %p62 = scmp.ne.s32.totalorder %s47, %s61
    %p63 = scmp.eq.s32.totalorder %s16, 0
    %p64 = por %p62, %p63
    %s66 = sadd.s32 %s65, 1
    %p69 = scmp.eq.s32.totalorder %s10, 3
    %p70 = scmp.ne.s32.totalorder %s65, %s67
    %p71 = scmp.eq.s32.totalorder %s10, 0
    %p72 = por %p70, %p71
    %p73 = scmp.ne.s32.totalorder %s65, %s67
    %p74 = scmp.eq.s32.totalorder %s15, 3
    %p75 = por %p73, %p74
    %p76 = scmp.ne.s32.totalorder %s67, %s68
    %p77 = scmp.eq.s32.totalorder %s15, 0
    %p78 = por %p76, %p77
    %p79 = scmp.ne.s32.totalorder %s67, %s68
    %p80 = scmp.eq.s32.totalorder %s16, 3
    %p81 = por %p79, %p80
    %p83 = scmp.ne.s32.totalorder %s68, %s82
    %p84 = scmp.eq.s32.totalorder %s16, 0
    %p85 = por %p83, %p84
    %s86 = ssub.s32 %s10, %s17
    %p87 = scmp.eq.s32.totalorder %s86, 0
    %s89 = sadd.s32 %s88, 1
    %s90 = scalar_select %p87, %s88, %s89
    %p93 = pneg %p87
    %p94 = scmp.eq.s32.totalorder %s10, 3
    %p95 = por %p93, %p94
    %p96 = scmp.ne.s32.totalorder %s88, %s91
    %p97 = scmp.eq.s32.totalorder %s10, 0
    %p98 = por %p96, %p97
    %p99 = scmp.ne.s32.totalorder %s88, %s91
    %p100 = scmp.eq.s32.totalorder %s15, 3
    %p101 = por %p99, %p100
    %p102 = scmp.ne.s32.totalorder %s91, %s92
    %p103 = scmp.eq.s32.totalorder %s15, 0
    %p104 = por %p102, %p103
    %p105 = scmp.ne.s32.totalorder %s91, %s92
    %p106 = scmp.eq.s32.totalorder %s16, 3
    %p107 = por %p105, %p106
    %p109 = scmp.ne.s32.totalorder %s92, %s108
    %p110 = scmp.eq.s32.totalorder %s16, 0
    %p111 = por %p109, %p110
    %s112 = ssub.s32 %s10, %s17
    %p113 = scmp.eq.s32.totalorder %s112, 0
    %s115 = sadd.s32 %s114, 1
    %s116 = scalar_select %p113, %s114, %s115
    %p119 = pneg %p113
    %p120 = scmp.eq.s32.totalorder %s10, 3
    %p121 = por %p119, %p120
    %p122 = scmp.ne.s32.totalorder %s114, %s117
    %p123 = scmp.eq.s32.totalorder %s10, 0
    %p124 = por %p122, %p123
    %p125 = scmp.ne.s32.totalorder %s114, %s117
    %p126 = scmp.eq.s32.totalorder %s15, 3
    %p127 = por %p125, %p126
    %p128 = scmp.ne.s32.totalorder %s117, %s118
    %p129 = scmp.eq.s32.totalorder %s15, 0
    %p130 = por %p128, %p129
    %p131 = scmp.ne.s32.totalorder %s117, %s118
    %p132 = scmp.eq.s32.totalorder %s16, 3
    %p133 = por %p131, %p132
    %p135 = scmp.ne.s32.totalorder %s118, %s134
    %p136 = scmp.eq.s32.totalorder %s16, 0
    %p137 = por %p135, %p136
    %p138 = scmp.le.s32.totalorder 1, %s10
    %p139 = scmp.lt.s32.totalorder %s10, 5
    %p140 = pnand %p138, %p139
    %p141 = pneg %p140
    // Predicated region
    $region9: #{basic_block_forward.7} parent=5 // pred_check
      _
    $region10: #{basic_block_forward.7} parent=5 // pred_check_branch
      %143 = sbr.rel (%p140) target = $region12
    $region11: #{basic_block_forward.7} parent=5 // pred_region
      %s144 = ssub.s32 %s10, 1
      // Predicated region
      $region13: #{basic_block_forward.7} parent=11 // pred_check
        %p145 = pneg %p57
      $region14: #{basic_block_forward.7} parent=11 // pred_check_branch
        %147 = sbr.rel (%p145) target = $region16
      $region15: #{basic_block_forward.7} parent=11 // pred_region
        _
      $region16: #{basic_block_forward.7} parent=11 // pred_fallthru
        _
      // Predicated region
      $region17: #{basic_block_forward.7} parent=11 // pred_check
        %p148 = pneg %p78
      $region18: #{basic_block_forward.7} parent=11 // pred_check_branch
        %150 = sbr.rel (%p148) target = $region20
      $region19: #{basic_block_forward.7} parent=11 // pred_region
        _
      $region20: #{basic_block_forward.7} parent=11 // pred_fallthru
        _
    $region12: #{basic_block_forward.7} parent=5 // pred_fallthru
      _
    %p151 = scmp.lt.s32.totalorder %s10, 4
    // Predicated region
    $region21: #{basic_block_forward.7} parent=5 // pred_check
      %p152 = pneg %p151
    $region22: #{basic_block_forward.7} parent=5 // pred_check_branch
      %154 = sbr.rel (%p152) target = $region24
    $region23: #{basic_block_forward.7} parent=5 // pred_region
      // Predicated region
      $region25: #{basic_block_forward.7} parent=23 // pred_check
        %p155 = pneg %p30
      $region26: #{basic_block_forward.7} parent=23 // pred_check_branch
        %157 = sbr.rel (%p155) target = $region28
      $region27: #{basic_block_forward.7} parent=23 // pred_region
        %p158 = scmp.lt.s32.totalorder %s10, 3
        %s159 = scalar_select %p158, %s10, 3
        %s160 = smul.addr %s159, 18
        %s161 = smul.addr %s160, 8
        %s162 = scalar_lea.vmem %s0, %s161
      $region28: #{basic_block_forward.7} parent=23 // pred_fallthru
        _
      // Predicated region
      $region29: #{basic_block_forward.7} parent=23 // pred_check
        %p163 = pneg %p98
      $region30: #{basic_block_forward.7} parent=23 // pred_check_branch
        %165 = sbr.rel (%p163) target = $region32
      $region31: #{basic_block_forward.7} parent=23 // pred_region
        %p166 = scmp.lt.s32.totalorder %s10, 3
        %s167 = scalar_select %p166, %s10, 3
        %s168 = smul.addr %s167, 18
        %s169 = smul.addr %s168, 8
        %s170 = scalar_lea.vmem %s3, %s169
      $region32: #{basic_block_forward.7} parent=23 // pred_fallthru
        _
    $region24: #{basic_block_forward.7} parent=5 // pred_fallthru
      _
    %p171 = scmp.le.s32.totalorder 1, %s10
    %p172 = scmp.lt.s32.totalorder %s10, 5
    %p173 = pnand %p171, %p172
    %p174 = pneg %p173
    // Predicated region
    $region33: #{basic_block_forward.7} parent=5 // pred_check
      _
    $region34: #{basic_block_forward.7} parent=5 // pred_check_branch
      %176 = sbr.rel (%p173) target = $region36
    $region35: #{basic_block_forward.7} parent=5 // pred_region
      %s177 = ssub.s32 %s10, 1
      %p178 = scmp.lt.s32.totalorder %s15, 3
      %s179 = scalar_select %p178, %s15, 3
      %s180 = smul.addr %s179, 18
      %s181 = smul.addr %s180, 8
      %s182 = scalar_lea.vmem %s0, %s181
      %p183 = pneg %p36
      %p184 = pneg %p33
      %p185 = pneg %p57
      %p186 = pneg %p54
      %p187 = pneg %p78
      %p188 = pneg %p75
      %p189 = scmp.lt.s32.totalorder %s15, 3
      %s190 = scalar_select %p189, %s15, 3
      %s191 = smul.addr %s190, 18
      %s192 = smul.addr %s191, 8
      %s193 = scalar_lea.vmem %s3, %s192
      %p194 = pneg %p104
      %p195 = pneg %p101
      %p196 = pneg %p130
      %p197 = pneg %p127
      %p198 = scmp.lt.s32.totalorder %s15, 3
      %s199 = scalar_select %p198, %s15, 3
      %s200 = smul.addr %s199, 18
      %s201 = smul.addr %s200, 8
      %s202 = scalar_lea.vmem %s4, %s201
      %p203 = scmp.lt.s32.totalorder %s15, 3
      %s204 = scalar_select %p203, %s15, 3
      %s205 = smul.addr %s204, 18
      %s206 = smul.addr %s205, 8
      %s207 = scalar_lea.vmem %s0, %s206
      %p208 = scmp.lt.s32.totalorder %s15, 3
      %s209 = scalar_select %p208, %s15, 3
      %s210 = smul.addr %s209, 18
      %s211 = smul.addr %s210, 8
      %s212 = scalar_lea.vmem %s3, %s211
      %p213 = scmp.lt.s32.totalorder %s15, 3
      %s214 = scalar_select %p213, %s15, 3
      %s215 = smul.addr %s214, 18
      %s216 = smul.addr %s215, 8
      %s217 = scalar_lea.vmem %s4, %s216
      %v218 = vld [vmem:[%s207] sm:$0xff]
      %v219 = vld [vmem:[%s207 + $0x8] sm:$0xff]
      %v220 = vld [vmem:[%s207 + $0x10] sm:$0xff]
      %v221 = vld [vmem:[%s207 + $0x18] sm:$0xff]
      %v222 = vld [vmem:[%s207 + $0x20] sm:$0xff]
      %v223 = vld [vmem:[%s207 + $0x28] sm:$0xff]
      %v224 = vld [vmem:[%s207 + $0x30] sm:$0xff]
      %v225 = vld [vmem:[%s207 + $0x38] sm:$0xff]
      %v226 = vld [vmem:[%s207 + $0x40] sm:$0xff]
      %v227 = vld [vmem:[%s207 + $0x48] sm:$0xff]
      %v228 = vld [vmem:[%s207 + $0x50] sm:$0xff]
      %v229 = vld [vmem:[%s207 + $0x58] sm:$0xff]
      %v230 = vld [vmem:[%s207 + $0x60] sm:$0xff]
      %v231 = vld [vmem:[%s207 + $0x68] sm:$0xff]
      %v232 = vld [vmem:[%s207 + $0x70] sm:$0xff]
      %v233 = vld [vmem:[%s207 + $0x78] sm:$0xff]
      %v234 = vld [vmem:[%s207 + $0x80] sm:$0xff]
      %v235 = vld [vmem:[%s207 + $0x88] sm:$0xff]
      %v236 = vld [vmem:[%s1] sm:$0x1]
      %v238 = vperm.slane %v236, 0
      %v240 = vmul.f32 %v218, %v238
      %v241 = vmul.f32 %v219, %v238
      %v242 = vmul.f32 %v220, %v238
      %v243 = vmul.f32 %v221, %v238
      %v244 = vmul.f32 %v222, %v238
      %v245 = vmul.f32 %v223, %v238
      %v246 = vmul.f32 %v224, %v238
      %v247 = vmul.f32 %v225, %v238
      %v248 = vmul.f32 %v226, %v238
      %v249 = vmul.f32 %v227, %v238
      %v250 = vmul.f32 %v228, %v238
      %v251 = vmul.f32 %v229, %v238
      %v252 = vmul.f32 %v230, %v238
      %v253 = vmul.f32 %v231, %v238
      %v254 = vmul.f32 %v232, %v238
      %v255 = vmul.f32 %v233, %v238
      %v256 = vmul.f32 %v234, %v238
      %v257 = vmul.f32 %v235, %v238
      %v258 = vld [vmem:[%s2] sm:$0x1]
      %v260 = vperm.slane %v258, 0
      %v262 = vadd.f32 %v240, %v260
      %v263 = vadd.f32 %v241, %v260
      %v264 = vadd.f32 %v242, %v260
      %v265 = vadd.f32 %v243, %v260
      %v266 = vadd.f32 %v244, %v260
      %v267 = vadd.f32 %v245, %v260
      %v268 = vadd.f32 %v246, %v260
      %v269 = vadd.f32 %v247, %v260
      %v270 = vadd.f32 %v248, %v260
      %v271 = vadd.f32 %v249, %v260
      %v272 = vadd.f32 %v250, %v260
      %v273 = vadd.f32 %v251, %v260
      %v274 = vadd.f32 %v252, %v260
      %v275 = vadd.f32 %v253, %v260
      %v276 = vadd.f32 %v254, %v260
      %v277 = vadd.f32 %v255, %v260
      %v278 = vadd.f32 %v256, %v260
      %v279 = vadd.f32 %v257, %v260
      %v280 = vld [vmem:[%s212] sm:$0xff]
      %v281 = vld [vmem:[%s212 + $0x8] sm:$0xff]
      %v282 = vld [vmem:[%s212 + $0x10] sm:$0xff]
      %v283 = vld [vmem:[%s212 + $0x18] sm:$0xff]
      %v284 = vld [vmem:[%s212 + $0x20] sm:$0xff]
      %v285 = vld [vmem:[%s212 + $0x28] sm:$0xff]
      %v286 = vld [vmem:[%s212 + $0x30] sm:$0xff]
      %v287 = vld [vmem:[%s212 + $0x38] sm:$0xff]
      %v288 = vld [vmem:[%s212 + $0x40] sm:$0xff]
      %v289 = vld [vmem:[%s212 + $0x48] sm:$0xff]
      %v290 = vld [vmem:[%s212 + $0x50] sm:$0xff]
      %v291 = vld [vmem:[%s212 + $0x58] sm:$0xff]
      %v292 = vld [vmem:[%s212 + $0x60] sm:$0xff]
      %v293 = vld [vmem:[%s212 + $0x68] sm:$0xff]
      %v294 = vld [vmem:[%s212 + $0x70] sm:$0xff]
      %v295 = vld [vmem:[%s212 + $0x78] sm:$0xff]
      %v296 = vld [vmem:[%s212 + $0x80] sm:$0xff]
      %v297 = vld [vmem:[%s212 + $0x88] sm:$0xff]
      %v298 = vadd.f32 %v262, %v280
      %v299 = vadd.f32 %v263, %v281
      %v300 = vadd.f32 %v264, %v282
      %v301 = vadd.f32 %v265, %v283
      %v302 = vadd.f32 %v266, %v284
      %v303 = vadd.f32 %v267, %v285
      %v304 = vadd.f32 %v268, %v286
      %v305 = vadd.f32 %v269, %v287
      %v306 = vadd.f32 %v270, %v288
      %v307 = vadd.f32 %v271, %v289
      %v308 = vadd.f32 %v272, %v290
      %v309 = vadd.f32 %v273, %v291
      %v310 = vadd.f32 %v274, %v292
      %v311 = vadd.f32 %v275, %v293
      %v312 = vadd.f32 %v276, %v294
      %v313 = vadd.f32 %v277, %v295
      %v314 = vadd.f32 %v278, %v296
      %v315 = vadd.f32 %v279, %v297
      %v316 = vmax.f32 %v298, 0.0
      %v317 = vmax.f32 %v299, 0.0
      %v318 = vmax.f32 %v300, 0.0
      %v319 = vmax.f32 %v301, 0.0
      %v320 = vmax.f32 %v302, 0.0
      %v321 = vmax.f32 %v303, 0.0
      %v322 = vmax.f32 %v304, 0.0
      %v323 = vmax.f32 %v305, 0.0
      %v324 = vmax.f32 %v306, 0.0
      %v325 = vmax.f32 %v307, 0.0
      %v326 = vmax.f32 %v308, 0.0
      %v327 = vmax.f32 %v309, 0.0
      %v328 = vmax.f32 %v310, 0.0
      %v329 = vmax.f32 %v311, 0.0
      %v330 = vmax.f32 %v312, 0.0
      %v331 = vmax.f32 %v313, 0.0
      %v332 = vmax.f32 %v314, 0.0
      %v333 = vmax.f32 %v315, 0.0
      %334 = vst [vmem:[%s217] sm:$0xff] %v316
      %335 = vst [vmem:[%s217 + $0x8] sm:$0xff] %v317
      %336 = vst [vmem:[%s217 + $0x10] sm:$0xff] %v318
      %337 = vst [vmem:[%s217 + $0x18] sm:$0xff] %v319
      %338 = vst [vmem:[%s217 + $0x20] sm:$0xff] %v320
      %339 = vst [vmem:[%s217 + $0x28] sm:$0xff] %v321
      %340 = vst [vmem:[%s217 + $0x30] sm:$0xff] %v322
      %341 = vst [vmem:[%s217 + $0x38] sm:$0xff] %v323
      %342 = vst [vmem:[%s217 + $0x40] sm:$0xff] %v324
      %343 = vst [vmem:[%s217 + $0x48] sm:$0xff] %v325
      %344 = vst [vmem:[%s217 + $0x50] sm:$0xff] %v326
      %345 = vst [vmem:[%s217 + $0x58] sm:$0xff] %v327
      %346 = vst [vmem:[%s217 + $0x60] sm:$0xff] %v328
      %347 = vst [vmem:[%s217 + $0x68] sm:$0xff] %v329
      %348 = vst [vmem:[%s217 + $0x70] sm:$0xff] %v330
      %349 = vst [vmem:[%s217 + $0x78] sm:$0xff] %v331
      %350 = vst [vmem:[%s217 + $0x80] sm:$0xff] %v332
      %351 = vst [vmem:[%s217 + $0x88] sm:$0xff] %v333
      %p352 = scmp.lt.s32.totalorder %s15, 3
      %s353 = scalar_select %p352, %s15, 3
      %s354 = smul.addr %s353, 18
      %s355 = smul.addr %s354, 8
      %s356 = scalar_lea.vmem %s4, %s355
      // Predicated region
      $region37: #{basic_block_forward.7} parent=35 // pred_check
        %p357 = pneg %p127
      $region38: #{basic_block_forward.7} parent=35 // pred_check_branch
        %359 = sbr.rel (%p357) target = $region40
      $region39: #{basic_block_forward.7} parent=35 // pred_region
        _
      $region40: #{basic_block_forward.7} parent=35 // pred_fallthru
        _
    $region36: #{basic_block_forward.7} parent=5 // pred_fallthru
      _
    %p360 = scmp.le.s32.totalorder 2, %s10
    // Predicated region
    $region41: #{basic_block_forward.7} parent=5 // pred_check
      %p361 = pneg %p360
    $region42: #{basic_block_forward.7} parent=5 // pred_check_branch
      %363 = sbr.rel (%p361) target = $region44
    $region43: #{basic_block_forward.7} parent=5 // pred_region
      %s364 = ssub.s32 %s10, 2
      // Predicated region
      $region45: #{basic_block_forward.7} parent=43 // pred_check
        %p365 = pneg %p133
      $region46: #{basic_block_forward.7} parent=43 // pred_check_branch
        %367 = sbr.rel (%p365) target = $region48
      $region47: #{basic_block_forward.7} parent=43 // pred_region
        %p368 = scmp.lt.s32.totalorder %s16, 3
        %s369 = scalar_select %p368, %s16, 3
        %s370 = smul.addr %s369, 18
        %s371 = smul.addr %s370, 8
        %s372 = scalar_lea.vmem %s4, %s371
      $region48: #{basic_block_forward.7} parent=43 // pred_fallthru
        _
    $region44: #{basic_block_forward.7} parent=5 // pred_fallthru
      _
  $region6: #{basic_block_forward.7} parent=0 // loop_footer
    %s14 = sadd.s32 1, %s10
  $region7: #{basic_block_forward.7} parent=0 // loop_footer_branch
    %9 = sbr.rel target = $region3
  $region8: #{basic_block_forward.7} parent=0 // loop_exit
    _

</llo_original>
